<compile_context>
chip_gen: v7x
topology: tpu7x:2x2x1
jax: 0.10.0
libtpu: 0.0.40
codegen_flags: <defaults>
</compile_context>

<pallas_src>
import numpy as np

import jax
import jax.numpy as jnp
from jax.experimental import pallas as pl
from jax.experimental.pallas import tpu as pltpu


# --------------------------------------------------------------------------
# Fused Pallas kernel: whole LeNet5 forward for one image per grid step.
# --------------------------------------------------------------------------

def _lenet5_kernel(xp_ref, pl14_ref, pl5_ref,
                   b1eff_ref, bias1_ref, b2eff_ref, bias2_ref,
                   w1fc_ref, b1fc_ref, w2fc_ref, b2fc_ref, w3fc_ref, b3fc_ref,
                   out_ref):
    f32 = jnp.float32
    x = xp_ref[0]                                                   # (32, 32) padded image

    # ---- conv1 (1->6, k=5, pad=2) + 2x2 avg-pool, as one banded GEMM ----
    # A1[i, di*32 + c] = x[i + di, c]   (row-tap im2col, built in VMEM)
    a1 = jnp.concatenate([x[di:di + 28, :] for di in range(5)], axis=1)      # (28, 160)
    a1p = jnp.dot(pl14_ref[...], a1, preferred_element_type=f32)             # (14, 160) row pool
    # column taps + channel weights + column pool are folded into b1eff.
    p1 = jnp.dot(a1p, b1eff_ref[...], preferred_element_type=f32) \
        + bias1_ref[...]                                                     # (14, 84) = [r, ic*14 + c]

    # ---- conv2 (6->16, k=5, pad=0) + 2x2 avg-pool, same trick ----
    # A2[i, (ic*5 + di)*14 + c] = p1[i + di, ic*14 + c]
    a2 = jnp.concatenate(
        [p1[di:di + 10, ic * 14:(ic + 1) * 14]
         for ic in range(6) for di in range(5)], axis=1)                     # (10, 420)
    a2p = jnp.dot(pl5_ref[...], a2, preferred_element_type=f32)              # (5, 420) row pool
    p2 = jnp.dot(a2p, b2eff_ref[...], preferred_element_type=f32) \
        + bias2_ref[...]                                                     # (5, 80) = [a, oc*5 + b]

    # ---- flatten + fc1(400->120) + ReLU  (flatten order folded into w1fc) ----
    f = jnp.concatenate([p2[a:a + 1, :] for a in range(5)], axis=1)          # (1, 400)
    h = jnp.dot(f, w1fc_ref[...], preferred_element_type=f32) + b1fc_ref[...]
    h = jnp.maximum(h, 0.0)                                                  # (1, 128) padded

    # ---- fc2(120->84) + ReLU ----
    h = jnp.dot(h, w2fc_ref[...], preferred_element_type=f32) + b2fc_ref[...]
    h = jnp.maximum(h, 0.0)                                                  # (1, 128) padded

    # ---- fc3(84->10) ----
    out = jnp.dot(h, w3fc_ref[...], preferred_element_type=f32) + b3fc_ref[...]
    out_ref[...] = out.reshape(1, 1, 128)                                    # lane-dense store


# --------------------------------------------------------------------------
# One-time parameter preprocessing (all transposes / banded matrices / padding)
# --------------------------------------------------------------------------

_PREP_KEYS = ("pl14", "pl5", "b1eff", "bias1", "b2eff", "bias2",
              "w1fc", "b1fc", "w2fc", "b2fc", "w3fc", "b3fc")


def preprocess_params(params):
    w1 = np.asarray(params["w_conv1"], np.float32)   # (6, 1, 5, 5)
    b1 = np.asarray(params["b_conv1"], np.float32)   # (6,)
    w2 = np.asarray(params["w_conv2"], np.float32)   # (16, 6, 5, 5)
    b2 = np.asarray(params["b_conv2"], np.float32)   # (16,)
    wf1 = np.asarray(params["w_fc1"], np.float32)    # (120, 400)
    bf1 = np.asarray(params["b_fc1"], np.float32)
    wf2 = np.asarray(params["w_fc2"], np.float32)    # (84, 120)
    bf2 = np.asarray(params["b_fc2"], np.float32)
    wf3 = np.asarray(params["w_fc3"], np.float32)    # (10, 84)
    bf3 = np.asarray(params["b_fc3"], np.float32)

    # Row-pool matrices (0.5 per tap); the matching 0.5 column pool is folded
    # into b1eff/b2eff, yielding the exact 2x2 mean.
    def row_pool(rows_out):
        m = np.zeros((rows_out, 2 * rows_out), np.float32)
        for r in range(rows_out):
            m[r, 2 * r] = 0.5
            m[r, 2 * r + 1] = 0.5
        return m

    pl14 = row_pool(14)   # (14, 28)
    pl5 = row_pool(5)     # (5, 10)

    # conv1 as a banded GEMM over padded 32-wide rows.
    # B1[di*32 + (j+dj), oc*28 + j] = w1[oc, 0, di, dj]
    B1 = np.zeros((5 * 32, 6 * 28), np.float32)
    for oc in range(6):
        for di in range(5):
            for j in range(28):
                for dj in range(5):
                    B1[di * 32 + j + dj, oc * 28 + j] += w1[oc, 0, di, dj]
    PR1 = np.zeros((6 * 28, 6 * 14), np.float32)     # per-channel column pool
    for oc in range(6):
        for c in range(14):
            PR1[oc * 28 + 2 * c, oc * 14 + c] = 0.5
            PR1[oc * 28 + 2 * c + 1, oc * 14 + c] = 0.5
    b1eff = B1 @ PR1                                 # (160, 84)
    bias1 = np.repeat(b1, 14)[None, :]               # (1, 84)

    # conv2 as a banded GEMM over the (14-wide) pool1 rows.
    # B2[(ic*5 + di)*14 + (j+dj), oc*10 + j] = w2[oc, ic, di, dj]
    B2 = np.zeros((6 * 5 * 14, 16 * 10), np.float32)
    for oc in range(16):
        for ic in range(6):
            for di in range(5):
                for j in range(10):
                    for dj in range(5):
                        B2[(ic * 5 + di) * 14 + j + dj, oc * 10 + j] += w2[oc, ic, di, dj]
    PR2 = np.zeros((16 * 10, 16 * 5), np.float32)    # per-channel column pool
    for oc in range(16):
        for c in range(5):
            PR2[oc * 10 + 2 * c, oc * 5 + c] = 0.5
            PR2[oc * 10 + 2 * c + 1, oc * 5 + c] = 0.5
    b2eff = B2 @ PR2                                 # (420, 80)
    bias2 = np.repeat(b2, 5)[None, :]                # (1, 80)

    # fc1: in-kernel flatten order is k' = a*80 + oc*5 + b; PyTorch order is
    # k = oc*25 + a*5 + b.  Fold the permutation (and 120->128 lane pad) here.
    w1fc = np.zeros((400, 128), np.float32)
    for a in range(5):
        for oc in range(16):
            for b in range(5):
                w1fc[a * 80 + oc * 5 + b, :120] = wf1[:, oc * 25 + a * 5 + b]
    b1fc = np.zeros((1, 128), np.float32)
    b1fc[0, :120] = bf1

    w2fc = np.zeros((128, 128), np.float32)
    w2fc[:120, :84] = wf2.T
    b2fc = np.zeros((1, 128), np.float32)
    b2fc[0, :84] = bf2

    w3fc = np.zeros((128, 128), np.float32)
    w3fc[:84, :10] = wf3.T
    b3fc = np.zeros((1, 128), np.float32)
    b3fc[0, :10] = bf3

    vals = (pl14, pl5, b1eff, bias1, b2eff, bias2,
            w1fc, b1fc, w2fc, b2fc, w3fc, b3fc)
    return {k: jnp.asarray(v) for k, v in zip(_PREP_KEYS, vals)}


# --------------------------------------------------------------------------
# Forward pass: one fused pallas_call over a batch-parallel grid.
# --------------------------------------------------------------------------

def lenet5_forward(x, prep):
    """x: (N, 1, 28, 28) f32, prep: dict from preprocess_params -> (N, 10)."""
    N = x.shape[0]
    xp = jnp.pad(x[:, 0, :, :], ((0, 0), (2, 2), (2, 2)))          # (N, 32, 32)

    consts = [prep[k] for k in _PREP_KEYS]

    def const_spec(arr):
        nd = arr.ndim
        return pl.BlockSpec(arr.shape, lambda n, _nd=nd: (0,) * _nd)

    out = pl.pallas_call(
        _lenet5_kernel,
        out_shape=jax.ShapeDtypeStruct((N, 1, 128), jnp.float32),
        grid=(N,),
        in_specs=[pl.BlockSpec((1, 32, 32), lambda n: (n, 0, 0))]
                 + [const_spec(a) for a in consts],
        out_specs=pl.BlockSpec((1, 1, 128), lambda n: (n, 0, 0)),
        compiler_params=pltpu.CompilerParams(
            dimension_semantics=("parallel",)),
    )(xp, *consts)
    return out[:, 0, :10]                                          # drop lane padding


# --------------------------------------------------------------------------
# Pure-JAX reference (correctness sanity check)
# --------------------------------------------------------------------------

def lenet5_reference(x, params):
    def conv(x, w, b, pad):
        y = jax.lax.conv_general_dilated(
            x, w, window_strides=(1, 1), padding=((pad, pad), (pad, pad)),
            dimension_numbers=("NCHW", "OIHW", "NCHW"))
        return y + b[None, :, None, None]

    def pool(x):
        N, C, H, W = x.shape
        return jnp.mean(x.reshape(N, C, H // 2, 2, W // 2, 2), axis=(3, 5))

    y = pool(conv(x, params["w_conv1"], params["b_conv1"], 2))
    y = pool(conv(y, params["w_conv2"], params["b_conv2"], 0))
    f = y.reshape(y.shape[0], -1)
    h = jnp.maximum(f @ params["w_fc1"].T + params["b_fc1"], 0.0)
    h = jnp.maximum(h @ params["w_fc2"].T + params["b_fc2"], 0.0)
    return h @ params["w_fc3"].T + params["b_fc3"]


# --------------------------------------------------------------------------
# Main
# --------------------------------------------------------------------------

def init_params(key):
    ks = jax.random.split(key, 10)
    s = 0.05
    return {
        "w_conv1": s * jax.random.normal(ks[0], (6, 1, 5, 5), jnp.float32),
        "b_conv1": s * jax.random.normal(ks[1], (6,), jnp.float32),
        "w_conv2": s * jax.random.normal(ks[2], (16, 6, 5, 5), jnp.float32),
        "b_conv2": s * jax.random.normal(ks[3], (16,), jnp.float32),
        "w_fc1": s * jax.random.normal(ks[4], (120, 400), jnp.float32),
        "b_fc1": s * jax.random.normal(ks[5], (120,), jnp.float32),
        "w_fc2": s * jax.random.normal(ks[6], (84, 120), jnp.float32),
        "b_fc2": s * jax.random.normal(ks[7], (84,), jnp.float32),
        "w_fc3": s * jax.random.normal(ks[8], (10, 84), jnp.float32),
        "b_fc3": s * jax.random.normal(ks[9], (10,), jnp.float32),
    }


if __name__ == "__main__":
    key = jax.random.PRNGKey(0)
    k_x, k_p = jax.random.split(key)
    # LeNet5's FC head (16*5*5) requires a 1x28x28 input; batch kept small.
    x = jax.random.normal(k_x, (2, 1, 28, 28), jnp.float32)
    params = init_params(k_p)
    prep = preprocess_params(params)        # one-time weight preprocessing

    fwd = jax.jit(lenet5_forward)
    out = jax.block_until_ready(fwd(x, prep))
    assert out.shape == (2, 10) and out.dtype == jnp.float32

    ref = jax.block_until_ready(lenet5_reference(x, params))
    assert jnp.allclose(out, ref, rtol=1e-3, atol=1e-3), "Pallas output != reference"

    print("KERNEL_OK")
</pallas_src>

<mosaic_0001>
module attributes {stable_mosaic.version = 11 : i64} {
  func.func @_lenet5_kernel(%arg0: i32, %arg1: memref<1x32x32xf32, #tpu.memory_space<vmem>>, %arg2: memref<14x28xf32, #tpu.memory_space<vmem>>, %arg3: memref<5x10xf32, #tpu.memory_space<vmem>>, %arg4: memref<160x84xf32, #tpu.memory_space<vmem>>, %arg5: memref<1x84xf32, #tpu.memory_space<vmem>>, %arg6: memref<420x80xf32, #tpu.memory_space<vmem>>, %arg7: memref<1x80xf32, #tpu.memory_space<vmem>>, %arg8: memref<400x128xf32, #tpu.memory_space<vmem>>, %arg9: memref<1x128xf32, #tpu.memory_space<vmem>>, %arg10: memref<128x128xf32, #tpu.memory_space<vmem>>, %arg11: memref<1x128xf32, #tpu.memory_space<vmem>>, %arg12: memref<128x128xf32, #tpu.memory_space<vmem>>, %arg13: memref<1x128xf32, #tpu.memory_space<vmem>>, %arg14: memref<1x1x128xf32, #tpu.memory_space<vmem>>) attributes {dimension_semantics = [#tpu.dimension_semantics<parallel>], iteration_bounds = array<i64: 2>, scalar_prefetch = 0 : i64, scratch_operands = 0 : i64, tpu.core_type = #tpu.core_type<tc>, window_params = [{transform_indices = @transform_0, window_bounds = array<i64: 1, 32, 32>}, {pipeline_mode = #tpu.pipeline_mode<synchronous>, transform_indices = @transform_1, window_bounds = array<i64: 14, 28>}, {pipeline_mode = #tpu.pipeline_mode<synchronous>, transform_indices = @transform_2, window_bounds = array<i64: 5, 10>}, {pipeline_mode = #tpu.pipeline_mode<synchronous>, transform_indices = @transform_3, window_bounds = array<i64: 160, 84>}, {pipeline_mode = #tpu.pipeline_mode<synchronous>, transform_indices = @transform_4, window_bounds = array<i64: 1, 84>}, {pipeline_mode = #tpu.pipeline_mode<synchronous>, transform_indices = @transform_5, window_bounds = array<i64: 420, 80>}, {pipeline_mode = #tpu.pipeline_mode<synchronous>, transform_indices = @transform_6, window_bounds = array<i64: 1, 80>}, {pipeline_mode = #tpu.pipeline_mode<synchronous>, transform_indices = @transform_7, window_bounds = array<i64: 400, 128>}, {pipeline_mode = #tpu.pipeline_mode<synchronous>, transform_indices = @transform_8, window_bounds = array<i64: 1, 128>}, {pipeline_mode = #tpu.pipeline_mode<synchronous>, transform_indices = @transform_9, window_bounds = array<i64: 128, 128>}, {pipeline_mode = #tpu.pipeline_mode<synchronous>, transform_indices = @transform_10, window_bounds = array<i64: 1, 128>}, {pipeline_mode = #tpu.pipeline_mode<synchronous>, transform_indices = @transform_11, window_bounds = array<i64: 128, 128>}, {pipeline_mode = #tpu.pipeline_mode<synchronous>, transform_indices = @transform_12, window_bounds = array<i64: 1, 128>}, {transform_indices = @transform_13, window_bounds = array<i64: 1, 1, 128>}]} {
    %c0 = arith.constant 0 : index
    %c0_0 = arith.constant 0 : index
    %c0_1 = arith.constant 0 : index
    %0 = vector.load %arg1[%c0, %c0_0, %c0_1] : memref<1x32x32xf32, #tpu.memory_space<vmem>>, vector<1x32x32xf32>
    %1 = vector.shape_cast %0 : vector<1x32x32xf32> to vector<32x32xf32>
    %2 = vector.extract_strided_slice %1 {offsets = [0, 0], sizes = [28, 32], strides = [1, 1]} : vector<32x32xf32> to vector<28x32xf32>
    %3 = vector.extract_strided_slice %1 {offsets = [1, 0], sizes = [28, 32], strides = [1, 1]} : vector<32x32xf32> to vector<28x32xf32>
    %4 = vector.extract_strided_slice %1 {offsets = [2, 0], sizes = [28, 32], strides = [1, 1]} : vector<32x32xf32> to vector<28x32xf32>
    %5 = vector.extract_strided_slice %1 {offsets = [3, 0], sizes = [28, 32], strides = [1, 1]} : vector<32x32xf32> to vector<28x32xf32>
    %6 = vector.extract_strided_slice %1 {offsets = [4, 0], sizes = [28, 32], strides = [1, 1]} : vector<32x32xf32> to vector<28x32xf32>
    %7 = tpu.concatenate %2, %3, %4, %5, %6 in 1 : vector<28x32xf32>, vector<28x32xf32>, vector<28x32xf32>, vector<28x32xf32>, vector<28x32xf32> -> vector<28x160xf32>
    %c0_2 = arith.constant 0 : index
    %c0_3 = arith.constant 0 : index
    %8 = vector.load %arg2[%c0_2, %c0_3] : memref<14x28xf32, #tpu.memory_space<vmem>>, vector<14x28xf32>
    %cst = arith.constant dense<0.000000e+00> : vector<14x160xf32>
    %9 = tpu.matmul %8, %7, %cst {dimension_numbers = #tpu.dot_dimension_numbers<[1], [0], [0], [1], [0, 0, 1, 1], [], []>} : vector<14x28xf32>, vector<28x160xf32>, vector<14x160xf32> -> vector<14x160xf32>
    %c0_4 = arith.constant 0 : index
    %c0_5 = arith.constant 0 : index
    %10 = vector.load %arg4[%c0_4, %c0_5] : memref<160x84xf32, #tpu.memory_space<vmem>>, vector<160x84xf32>
    %cst_6 = arith.constant dense<0.000000e+00> : vector<14x84xf32>
    %11 = tpu.matmul %9, %10, %cst_6 {dimension_numbers = #tpu.dot_dimension_numbers<[1], [0], [0], [1], [0, 0, 1, 1], [], []>} : vector<14x160xf32>, vector<160x84xf32>, vector<14x84xf32> -> vector<14x84xf32>
    %c0_7 = arith.constant 0 : index
    %c0_8 = arith.constant 0 : index
    %12 = vector.load %arg5[%c0_7, %c0_8] : memref<1x84xf32, #tpu.memory_space<vmem>>, vector<1x84xf32>
    %13 = vector.broadcast %12 : vector<1x84xf32> to vector<14x84xf32>
    %14 = arith.addf %11, %13 : vector<14x84xf32>
    %15 = vector.extract_strided_slice %14 {offsets = [0, 0], sizes = [10, 14], strides = [1, 1]} : vector<14x84xf32> to vector<10x14xf32>
    %16 = vector.extract_strided_slice %14 {offsets = [1, 0], sizes = [10, 14], strides = [1, 1]} : vector<14x84xf32> to vector<10x14xf32>
    %17 = vector.extract_strided_slice %14 {offsets = [2, 0], sizes = [10, 14], strides = [1, 1]} : vector<14x84xf32> to vector<10x14xf32>
    %18 = vector.extract_strided_slice %14 {offsets = [3, 0], sizes = [10, 14], strides = [1, 1]} : vector<14x84xf32> to vector<10x14xf32>
    %19 = vector.extract_strided_slice %14 {offsets = [4, 0], sizes = [10, 14], strides = [1, 1]} : vector<14x84xf32> to vector<10x14xf32>
    %20 = vector.extract_strided_slice %14 {offsets = [0, 14], sizes = [10, 14], strides = [1, 1]} : vector<14x84xf32> to vector<10x14xf32>
    %21 = vector.extract_strided_slice %14 {offsets = [1, 14], sizes = [10, 14], strides = [1, 1]} : vector<14x84xf32> to vector<10x14xf32>
    %22 = vector.extract_strided_slice %14 {offsets = [2, 14], sizes = [10, 14], strides = [1, 1]} : vector<14x84xf32> to vector<10x14xf32>
    %23 = vector.extract_strided_slice %14 {offsets = [3, 14], sizes = [10, 14], strides = [1, 1]} : vector<14x84xf32> to vector<10x14xf32>
    %24 = vector.extract_strided_slice %14 {offsets = [4, 14], sizes = [10, 14], strides = [1, 1]} : vector<14x84xf32> to vector<10x14xf32>
    %25 = vector.extract_strided_slice %14 {offsets = [0, 28], sizes = [10, 14], strides = [1, 1]} : vector<14x84xf32> to vector<10x14xf32>
    %26 = vector.extract_strided_slice %14 {offsets = [1, 28], sizes = [10, 14], strides = [1, 1]} : vector<14x84xf32> to vector<10x14xf32>
    %27 = vector.extract_strided_slice %14 {offsets = [2, 28], sizes = [10, 14], strides = [1, 1]} : vector<14x84xf32> to vector<10x14xf32>
    %28 = vector.extract_strided_slice %14 {offsets = [3, 28], sizes = [10, 14], strides = [1, 1]} : vector<14x84xf32> to vector<10x14xf32>
    %29 = vector.extract_strided_slice %14 {offsets = [4, 28], sizes = [10, 14], strides = [1, 1]} : vector<14x84xf32> to vector<10x14xf32>
    %30 = vector.extract_strided_slice %14 {offsets = [0, 42], sizes = [10, 14], strides = [1, 1]} : vector<14x84xf32> to vector<10x14xf32>
    %31 = vector.extract_strided_slice %14 {offsets = [1, 42], sizes = [10, 14], strides = [1, 1]} : vector<14x84xf32> to vector<10x14xf32>
    %32 = vector.extract_strided_slice %14 {offsets = [2, 42], sizes = [10, 14], strides = [1, 1]} : vector<14x84xf32> to vector<10x14xf32>
    %33 = vector.extract_strided_slice %14 {offsets = [3, 42], sizes = [10, 14], strides = [1, 1]} : vector<14x84xf32> to vector<10x14xf32>
    %34 = vector.extract_strided_slice %14 {offsets = [4, 42], sizes = [10, 14], strides = [1, 1]} : vector<14x84xf32> to vector<10x14xf32>
    %35 = vector.extract_strided_slice %14 {offsets = [0, 56], sizes = [10, 14], strides = [1, 1]} : vector<14x84xf32> to vector<10x14xf32>
    %36 = vector.extract_strided_slice %14 {offsets = [1, 56], sizes = [10, 14], strides = [1, 1]} : vector<14x84xf32> to vector<10x14xf32>
    %37 = vector.extract_strided_slice %14 {offsets = [2, 56], sizes = [10, 14], strides = [1, 1]} : vector<14x84xf32> to vector<10x14xf32>
    %38 = vector.extract_strided_slice %14 {offsets = [3, 56], sizes = [10, 14], strides = [1, 1]} : vector<14x84xf32> to vector<10x14xf32>
    %39 = vector.extract_strided_slice %14 {offsets = [4, 56], sizes = [10, 14], strides = [1, 1]} : vector<14x84xf32> to vector<10x14xf32>
    %40 = vector.extract_strided_slice %14 {offsets = [0, 70], sizes = [10, 14], strides = [1, 1]} : vector<14x84xf32> to vector<10x14xf32>
    %41 = vector.extract_strided_slice %14 {offsets = [1, 70], sizes = [10, 14], strides = [1, 1]} : vector<14x84xf32> to vector<10x14xf32>
    %42 = vector.extract_strided_slice %14 {offsets = [2, 70], sizes = [10, 14], strides = [1, 1]} : vector<14x84xf32> to vector<10x14xf32>
    %43 = vector.extract_strided_slice %14 {offsets = [3, 70], sizes = [10, 14], strides = [1, 1]} : vector<14x84xf32> to vector<10x14xf32>
    %44 = vector.extract_strided_slice %14 {offsets = [4, 70], sizes = [10, 14], strides = [1, 1]} : vector<14x84xf32> to vector<10x14xf32>
    %45 = tpu.concatenate %15, %16, %17, %18, %19, %20, %21, %22, %23, %24, %25, %26, %27, %28, %29, %30 in 1 : vector<10x14xf32>, vector<10x14xf32>, vector<10x14xf32>, vector<10x14xf32>, vector<10x14xf32>, vector<10x14xf32>, vector<10x14xf32>, vector<10x14xf32>, vector<10x14xf32>, vector<10x14xf32>, vector<10x14xf32>, vector<10x14xf32>, vector<10x14xf32>, vector<10x14xf32>, vector<10x14xf32>, vector<10x14xf32> -> vector<10x224xf32>
    %46 = tpu.concatenate %31, %32, %33, %34, %35, %36, %37, %38, %39, %40, %41, %42, %43, %44 in 1 : vector<10x14xf32>, vector<10x14xf32>, vector<10x14xf32>, vector<10x14xf32>, vector<10x14xf32>, vector<10x14xf32>, vector<10x14xf32>, vector<10x14xf32>, vector<10x14xf32>, vector<10x14xf32>, vector<10x14xf32>, vector<10x14xf32>, vector<10x14xf32>, vector<10x14xf32> -> vector<10x196xf32>
    %47 = tpu.concatenate %45, %46 in 1 : vector<10x224xf32>, vector<10x196xf32> -> vector<10x420xf32>
    %c0_9 = arith.constant 0 : index
    %c0_10 = arith.constant 0 : index
    %48 = vector.load %arg3[%c0_9, %c0_10] : memref<5x10xf32, #tpu.memory_space<vmem>>, vector<5x10xf32>
    %cst_11 = arith.constant dense<0.000000e+00> : vector<5x420xf32>
    %49 = tpu.matmul %48, %47, %cst_11 {dimension_numbers = #tpu.dot_dimension_numbers<[1], [0], [0], [1], [0, 0, 1, 1], [], []>} : vector<5x10xf32>, vector<10x420xf32>, vector<5x420xf32> -> vector<5x420xf32>
    %c0_12 = arith.constant 0 : index
    %c0_13 = arith.constant 0 : index
    %50 = vector.load %arg6[%c0_12, %c0_13] : memref<420x80xf32, #tpu.memory_space<vmem>>, vector<420x80xf32>
    %cst_14 = arith.constant dense<0.000000e+00> : vector<5x80xf32>
    %51 = tpu.matmul %49, %50, %cst_14 {dimension_numbers = #tpu.dot_dimension_numbers<[1], [0], [0], [1], [0, 0, 1, 1], [], []>} : vector<5x420xf32>, vector<420x80xf32>, vector<5x80xf32> -> vector<5x80xf32>
    %c0_15 = arith.constant 0 : index
    %c0_16 = arith.constant 0 : index
    %52 = vector.load %arg7[%c0_15, %c0_16] : memref<1x80xf32, #tpu.memory_space<vmem>>, vector<1x80xf32>
    %53 = vector.broadcast %52 : vector<1x80xf32> to vector<5x80xf32>
    %54 = arith.addf %51, %53 : vector<5x80xf32>
    %55 = vector.extract_strided_slice %54 {offsets = [0, 0], sizes = [1, 80], strides = [1, 1]} : vector<5x80xf32> to vector<1x80xf32>
    %56 = vector.extract_strided_slice %54 {offsets = [1, 0], sizes = [1, 80], strides = [1, 1]} : vector<5x80xf32> to vector<1x80xf32>
    %57 = vector.extract_strided_slice %54 {offsets = [2, 0], sizes = [1, 80], strides = [1, 1]} : vector<5x80xf32> to vector<1x80xf32>
    %58 = vector.extract_strided_slice %54 {offsets = [3, 0], sizes = [1, 80], strides = [1, 1]} : vector<5x80xf32> to vector<1x80xf32>
    %59 = vector.extract_strided_slice %54 {offsets = [4, 0], sizes = [1, 80], strides = [1, 1]} : vector<5x80xf32> to vector<1x80xf32>
    %60 = tpu.concatenate %55, %56, %57, %58, %59 in 1 : vector<1x80xf32>, vector<1x80xf32>, vector<1x80xf32>, vector<1x80xf32>, vector<1x80xf32> -> vector<1x400xf32>
    %c0_17 = arith.constant 0 : index
    %c0_18 = arith.constant 0 : index
    %61 = vector.load %arg8[%c0_17, %c0_18] : memref<400x128xf32, #tpu.memory_space<vmem>>, vector<400x128xf32>
    %cst_19 = arith.constant dense<0.000000e+00> : vector<1x128xf32>
    %62 = tpu.matmul %60, %61, %cst_19 {dimension_numbers = #tpu.dot_dimension_numbers<[1], [0], [0], [1], [0, 0, 1, 1], [], []>} : vector<1x400xf32>, vector<400x128xf32>, vector<1x128xf32> -> vector<1x128xf32>
    %c0_20 = arith.constant 0 : index
    %c0_21 = arith.constant 0 : index
    %63 = vector.load %arg9[%c0_20, %c0_21] : memref<1x128xf32, #tpu.memory_space<vmem>>, vector<1x128xf32>
    %64 = arith.addf %62, %63 : vector<1x128xf32>
    %cst_22 = arith.constant 0.000000e+00 : f32
    %65 = vector.broadcast %cst_22 : f32 to vector<1x128xf32>
    %66 = arith.maximumf %64, %65 : vector<1x128xf32>
    %c0_23 = arith.constant 0 : index
    %c0_24 = arith.constant 0 : index
    %67 = vector.load %arg10[%c0_23, %c0_24] : memref<128x128xf32, #tpu.memory_space<vmem>>, vector<128x128xf32>
    %cst_25 = arith.constant dense<0.000000e+00> : vector<1x128xf32>
    %68 = tpu.matmul %66, %67, %cst_25 {dimension_numbers = #tpu.dot_dimension_numbers<[1], [0], [0], [1], [0, 0, 1, 1], [], []>} : vector<1x128xf32>, vector<128x128xf32>, vector<1x128xf32> -> vector<1x128xf32>
    %c0_26 = arith.constant 0 : index
    %c0_27 = arith.constant 0 : index
    %69 = vector.load %arg11[%c0_26, %c0_27] : memref<1x128xf32, #tpu.memory_space<vmem>>, vector<1x128xf32>
    %70 = arith.addf %68, %69 : vector<1x128xf32>
    %cst_28 = arith.constant 0.000000e+00 : f32
    %71 = vector.broadcast %cst_28 : f32 to vector<1x128xf32>
    %72 = arith.maximumf %70, %71 : vector<1x128xf32>
    %c0_29 = arith.constant 0 : index
    %c0_30 = arith.constant 0 : index
    %73 = vector.load %arg12[%c0_29, %c0_30] : memref<128x128xf32, #tpu.memory_space<vmem>>, vector<128x128xf32>
    %cst_31 = arith.constant dense<0.000000e+00> : vector<1x128xf32>
    %74 = tpu.matmul %72, %73, %cst_31 {dimension_numbers = #tpu.dot_dimension_numbers<[1], [0], [0], [1], [0, 0, 1, 1], [], []>} : vector<1x128xf32>, vector<128x128xf32>, vector<1x128xf32> -> vector<1x128xf32>
    %c0_32 = arith.constant 0 : index
    %c0_33 = arith.constant 0 : index
    %75 = vector.load %arg13[%c0_32, %c0_33] : memref<1x128xf32, #tpu.memory_space<vmem>>, vector<1x128xf32>
    %76 = arith.addf %74, %75 : vector<1x128xf32>
    %77 = vector.shape_cast %76 : vector<1x128xf32> to vector<1x1x128xf32>
    %c0_34 = arith.constant 0 : index
    %c0_35 = arith.constant 0 : index
    %c0_36 = arith.constant 0 : index
    %78 = vector.load %arg14[%c0_34, %c0_35, %c0_36] : memref<1x1x128xf32, #tpu.memory_space<vmem>>, vector<1x1x128xf32>
    tpu.vector_store %arg14[%c0_34, %c0_35, %c0_36], %77 {strides = array<i32>} : memref<1x1x128xf32, #tpu.memory_space<vmem>>, vector<1x1x128xf32>,
    return
  }
  func.func @transform_0(%arg0: i32) -> (i32, i32, i32) {
    %c0_i32 = arith.constant 0 : i32
    %c0_i32_0 = arith.constant 0 : i32
    %c0_i32_1 = arith.constant 0 : i32
    return %arg0, %c0_i32, %c0_i32_0 : i32, i32, i32
  }
  func.func @transform_1(%arg0: i32) -> (i32, i32) {
    %c0_i32 = arith.constant 0 : i32
    %c0_i32_0 = arith.constant 0 : i32
    %c0_i32_1 = arith.constant 0 : i32
    return %c0_i32, %c0_i32_0 : i32, i32
  }
  func.func @transform_2(%arg0: i32) -> (i32, i32) {
    %c0_i32 = arith.constant 0 : i32
    %c0_i32_0 = arith.constant 0 : i32
    %c0_i32_1 = arith.constant 0 : i32
    return %c0_i32, %c0_i32_0 : i32, i32
  }
  func.func @transform_3(%arg0: i32) -> (i32, i32) {
    %c0_i32 = arith.constant 0 : i32
    %c0_i32_0 = arith.constant 0 : i32
    %c0_i32_1 = arith.constant 0 : i32
    return %c0_i32, %c0_i32_0 : i32, i32
  }
  func.func @transform_4(%arg0: i32) -> (i32, i32) {
    %c0_i32 = arith.constant 0 : i32
    %c0_i32_0 = arith.constant 0 : i32
    %c0_i32_1 = arith.constant 0 : i32
    return %c0_i32, %c0_i32_0 : i32, i32
  }
  func.func @transform_5(%arg0: i32) -> (i32, i32) {
    %c0_i32 = arith.constant 0 : i32
    %c0_i32_0 = arith.constant 0 : i32
    %c0_i32_1 = arith.constant 0 : i32
    return %c0_i32, %c0_i32_0 : i32, i32
  }
  func.func @transform_6(%arg0: i32) -> (i32, i32) {
    %c0_i32 = arith.constant 0 : i32
    %c0_i32_0 = arith.constant 0 : i32
    %c0_i32_1 = arith.constant 0 : i32
    return %c0_i32, %c0_i32_0 : i32, i32
  }
  func.func @transform_7(%arg0: i32) -> (i32, i32) {
    %c0_i32 = arith.constant 0 : i32
    %c0_i32_0 = arith.constant 0 : i32
    %c0_i32_1 = arith.constant 0 : i32
    return %c0_i32, %c0_i32_0 : i32, i32
  }
  func.func @transform_8(%arg0: i32) -> (i32, i32) {
    %c0_i32 = arith.constant 0 : i32
    %c0_i32_0 = arith.constant 0 : i32
    %c0_i32_1 = arith.constant 0 : i32
    return %c0_i32, %c0_i32_0 : i32, i32
  }
  func.func @transform_9(%arg0: i32) -> (i32, i32) {
    %c0_i32 = arith.constant 0 : i32
    %c0_i32_0 = arith.constant 0 : i32
    %c0_i32_1 = arith.constant 0 : i32
    return %c0_i32, %c0_i32_0 : i32, i32
  }
  func.func @transform_10(%arg0: i32) -> (i32, i32) {
    %c0_i32 = arith.constant 0 : i32
    %c0_i32_0 = arith.constant 0 : i32
    %c0_i32_1 = arith.constant 0 : i32
    return %c0_i32, %c0_i32_0 : i32, i32
  }
  func.func @transform_11(%arg0: i32) -> (i32, i32) {
    %c0_i32 = arith.constant 0 : i32
    %c0_i32_0 = arith.constant 0 : i32
    %c0_i32_1 = arith.constant 0 : i32
    return %c0_i32, %c0_i32_0 : i32, i32
  }
  func.func @transform_12(%arg0: i32) -> (i32, i32) {
    %c0_i32 = arith.constant 0 : i32
    %c0_i32_0 = arith.constant 0 : i32
    %c0_i32_1 = arith.constant 0 : i32
    return %c0_i32, %c0_i32_0 : i32, i32
  }
  func.func @transform_13(%arg0: i32) -> (i32, i32, i32) {
    %c0_i32 = arith.constant 0 : i32
    %c0_i32_0 = arith.constant 0 : i32
    %c0_i32_1 = arith.constant 0 : i32
    return %arg0, %c0_i32, %c0_i32_0 : i32, i32, i32
  }
}

</mosaic_0001>

<llo_original>
// kernel: lenet5_forward.1
$region0: #{lenet5_forward.1}
  #allocation0 [shape = 'u32[]', space=smem, size = 0x4, offset = 0x4, fixed_abs, tag = 'smem constant byte address 0x4 - core index']
  #allocation1 [shape = 'u32[144,128]{1,0:T(1,128)}', space=vmem, size = 0x12000, scoped, tag = 'internal scratch']
  %s0 = inlined_call_operand.vmem [shape: f32[2,32,32], index: 0, kind: input, shape index: {}]
  %s1 = inlined_call_operand.vmem [shape: f32[14,28], index: 1, kind: input, shape index: {}]
  %s2 = inlined_call_operand.vmem [shape: f32[5,10], index: 2, kind: input, shape index: {}]
  %s3 = inlined_call_operand.vmem [shape: f32[160,84], index: 3, kind: input, shape index: {}]
  %s4 = inlined_call_operand.vmem [shape: f32[1,84], index: 4, kind: input, shape index: {}]
  %s5 = inlined_call_operand.vmem [shape: f32[420,80], index: 5, kind: input, shape index: {}]
  %s6 = inlined_call_operand.vmem [shape: f32[1,80], index: 6, kind: input, shape index: {}]
  %s7 = inlined_call_operand.vmem [shape: f32[400,128], index: 7, kind: input, shape index: {}]
  %s8 = inlined_call_operand.vmem [shape: f32[1,128], index: 8, kind: input, shape index: {}]
  %s9 = inlined_call_operand.vmem [shape: f32[128,128], index: 9, kind: input, shape index: {}]
  %s10 = inlined_call_operand.vmem [shape: f32[1,128], index: 10, kind: input, shape index: {}]
  %s11 = inlined_call_operand.hbm [shape: f32[128,128], index: 11, kind: input, shape index: {}]
  %s12 = inlined_call_operand.vmem [shape: f32[1,128], index: 12, kind: input, shape index: {}]
  %s13 = inlined_call_operand.hbm [shape: f32[2,1,128], index: 13, kind: output, shape index: {}]
  %s14 = sld [smem:[#allocation0]]
  $region89: #{lenet5_forward.1} parent=0
    _
  %s16 = ssub.s32 1, %s14
  %s17 = scalar_select 0, %s16, %s14
  $region1: #{lenet5_forward.1} parent=0
    #allocation2 [shape = 'u8[65536]{0}', space=vmem, size = 0x10000, scoped, tag = 'input window, operand 11, single buffered']
    #allocation3 [shape = 's32[2]{0}', space=sflag, size = 0x8, scoped, tag = 'scoped memory for lenet5_forward.1']
    #allocation4 [shape = 's32[2]{0}', space=sflag, size = 0x8, scoped, tag = 'scoped memory for lenet5_forward.1']
    #allocation5 [shape = 'u8[1024]{0}', space=vmem, size = 0x400, scoped, tag = 'output window, operand 0']
    %18 = vsyncpa [#allocation3], 0
    %19 = vsyncpa [#allocation4], 0
    %s20 = scalar_lea.sflag [#allocation4], 1
    %21 = vsyncpa %s20, 0
    loop: start=0, step=1, limit=4
    $region2: #{lenet5_forward.1} parent=1 // loop_pre_header
      _
    $region3: #{lenet5_forward.1} parent=1 // loop_header
      %s23 = sphi 0, %s27
      %p24 = scmp.ge.s32.totalorder %s23, 4
      %s33 = sphi 0, %s35
      %s36 = sphi 0, %s33
      %s37 = sphi 0, %s36
      %s53 = sphi 0, %s37
      %s57 = sphi 0, %s57
      %s59 = sphi 0, %s57
      %s60 = sphi 0, %s59
      %s74 = sphi 0, %s60
      %s78 = sphi 0, %s78
      %s80 = sphi 0, %s78
      %s81 = sphi 0, %s80
      %s95 = sphi 0, %s81
      %s99 = sphi 0, %s99
      %s101 = sphi 0, %s99
      %s102 = sphi 0, %s101
      %s116 = sphi 0, %s102
      %s120 = sphi 0, %s120
      %s122 = sphi 0, %s120
      %s123 = sphi 0, %s122
      %s137 = sphi 0, %s123
      %s141 = sphi 0, %s141
      %s143 = sphi 0, %s141
      %s144 = sphi 0, %s143
      %s158 = sphi 0, %s144
      %s162 = sphi 0, %s162
      %s164 = sphi 0, %s162
      %s165 = sphi 0, %s164
      %s179 = sphi 0, %s165
      %s183 = sphi 0, %s183
      %s185 = sphi 0, %s183
      %s186 = sphi 0, %s185
      %s200 = sphi 0, %s186
      %s204 = sphi 0, %s204
      %s206 = sphi 0, %s204
      %s207 = sphi 0, %s206
      %s221 = sphi 0, %s207
      %s225 = sphi 0, %s225
      %s227 = sphi 0, %s225
      %s228 = sphi 0, %s227
      %s242 = sphi 0, %s228
      %s246 = sphi 0, %s246
      %s248 = sphi 0, %s246
      %s249 = sphi 0, %s248
      %s263 = sphi 0, %s249
      %s267 = sphi 0, %s267
      %s269 = sphi 0, %s267
      %s270 = sphi 0, %s269
      %s284 = sphi 0, %s270
      %s288 = sphi 0, %s288
      %s290 = sphi 0, %s288
      %s291 = sphi 0, %s290
      %s305 = sphi 0, %s291
      %s311 = sphi 0, %s313
      %s314 = sphi 0, %s311
      %s315 = sphi 0, %s314
      %s331 = sphi 0, %s315
    $region4: #{lenet5_forward.1} parent=1 // loop_header_branch
      %26 = sbr.rel (%p24) target = $region8
    $region5: #{lenet5_forward.1} parent=1 // loop_body
      %s28 = ssub.s32 %s23, 1
      %s29 = ssub.s32 %s23, 2
      %s30 = sadd.s32 %s23, 1
      %s31 = ssub.s32 %s23, %s30
      %p32 = scmp.eq.s32.totalorder %s31, 0
      %s34 = sadd.s32 %s33, 1
      %s35 = scalar_select %p32, %s33, %s34
      %p38 = pneg %p32
      %p39 = scmp.eq.s32.totalorder %s23, 1
      %p40 = por %p38, %p39
      %p41 = scmp.ne.s32.totalorder %s33, %s36
      %p42 = scmp.eq.s32.totalorder %s23, 0
      %p43 = por %p41, %p42
      %p44 = scmp.ne.s32.totalorder %s33, %s36
      %p45 = scmp.eq.s32.totalorder %s28, 1
      %p46 = por %p44, %p45
      %p47 = scmp.ne.s32.totalorder %s36, %s37
      %p48 = scmp.eq.s32.totalorder %s28, 0
      %p49 = por %p47, %p48
      %p50 = scmp.ne.s32.totalorder %s36, %s37
      %p51 = scmp.eq.s32.totalorder %s29, 1
      %p52 = por %p50, %p51
      %p54 = scmp.ne.s32.totalorder %s37, %s53
      %p55 = scmp.eq.s32.totalorder %s29, 0
      %p56 = por %p54, %p55
      %s58 = sadd.s32 %s57, 1
      %p61 = scmp.eq.s32.totalorder %s23, 1
      %p62 = scmp.ne.s32.totalorder %s57, %s59
      %p63 = scmp.eq.s32.totalorder %s23, 0
      %p64 = por %p62, %p63
      %p65 = scmp.ne.s32.totalorder %s57, %s59
      %p66 = scmp.eq.s32.totalorder %s28, 1
      %p67 = por %p65, %p66
      %p68 = scmp.ne.s32.totalorder %s59, %s60
      %p69 = scmp.eq.s32.totalorder %s28, 0
      %p70 = por %p68, %p69
      %p71 = scmp.ne.s32.totalorder %s59, %s60
      %p72 = scmp.eq.s32.totalorder %s29, 1
      %p73 = por %p71, %p72
      %p75 = scmp.ne.s32.totalorder %s60, %s74
      %p76 = scmp.eq.s32.totalorder %s29, 0
      %p77 = por %p75, %p76
      %s79 = sadd.s32 %s78, 1
      %p82 = scmp.eq.s32.totalorder %s23, 1
      %p83 = scmp.ne.s32.totalorder %s78, %s80
      %p84 = scmp.eq.s32.totalorder %s23, 0
      %p85 = por %p83, %p84
      %p86 = scmp.ne.s32.totalorder %s78, %s80
      %p87 = scmp.eq.s32.totalorder %s28, 1
      %p88 = por %p86, %p87
      %p89 = scmp.ne.s32.totalorder %s80, %s81
      %p90 = scmp.eq.s32.totalorder %s28, 0
      %p91 = por %p89, %p90
      %p92 = scmp.ne.s32.totalorder %s80, %s81
      %p93 = scmp.eq.s32.totalorder %s29, 1
      %p94 = por %p92, %p93
      %p96 = scmp.ne.s32.totalorder %s81, %s95
      %p97 = scmp.eq.s32.totalorder %s29, 0
      %p98 = por %p96, %p97
      %s100 = sadd.s32 %s99, 1
      %p103 = scmp.eq.s32.totalorder %s23, 1
      %p104 = scmp.ne.s32.totalorder %s99, %s101
      %p105 = scmp.eq.s32.totalorder %s23, 0
      %p106 = por %p104, %p105
      %p107 = scmp.ne.s32.totalorder %s99, %s101
      %p108 = scmp.eq.s32.totalorder %s28, 1
      %p109 = por %p107, %p108
      %p110 = scmp.ne.s32.totalorder %s101, %s102
      %p111 = scmp.eq.s32.totalorder %s28, 0
      %p112 = por %p110, %p111
      %p113 = scmp.ne.s32.totalorder %s101, %s102
      %p114 = scmp.eq.s32.totalorder %s29, 1
      %p115 = por %p113, %p114
      %p117 = scmp.ne.s32.totalorder %s102, %s116
      %p118 = scmp.eq.s32.totalorder %s29, 0
      %p119 = por %p117, %p118
      %s121 = sadd.s32 %s120, 1
      %p124 = scmp.eq.s32.totalorder %s23, 1
      %p125 = scmp.ne.s32.totalorder %s120, %s122
      %p126 = scmp.eq.s32.totalorder %s23, 0
      %p127 = por %p125, %p126
      %p128 = scmp.ne.s32.totalorder %s120, %s122
      %p129 = scmp.eq.s32.totalorder %s28, 1
      %p130 = por %p128, %p129
      %p131 = scmp.ne.s32.totalorder %s122, %s123
      %p132 = scmp.eq.s32.totalorder %s28, 0
      %p133 = por %p131, %p132
      %p134 = scmp.ne.s32.totalorder %s122, %s123
      %p135 = scmp.eq.s32.totalorder %s29, 1
      %p136 = por %p134, %p135
      %p138 = scmp.ne.s32.totalorder %s123, %s137
      %p139 = scmp.eq.s32.totalorder %s29, 0
      %p140 = por %p138, %p139
      %s142 = sadd.s32 %s141, 1
      %p145 = scmp.eq.s32.totalorder %s23, 1
      %p146 = scmp.ne.s32.totalorder %s141, %s143
      %p147 = scmp.eq.s32.totalorder %s23, 0
      %p148 = por %p146, %p147
      %p149 = scmp.ne.s32.totalorder %s141, %s143
      %p150 = scmp.eq.s32.totalorder %s28, 1
      %p151 = por %p149, %p150
      %p152 = scmp.ne.s32.totalorder %s143, %s144
      %p153 = scmp.eq.s32.totalorder %s28, 0
      %p154 = por %p152, %p153
      %p155 = scmp.ne.s32.totalorder %s143, %s144
      %p156 = scmp.eq.s32.totalorder %s29, 1
      %p157 = por %p155, %p156
      %p159 = scmp.ne.s32.totalorder %s144, %s158
      %p160 = scmp.eq.s32.totalorder %s29, 0
      %p161 = por %p159, %p160
      %s163 = sadd.s32 %s162, 1
      %p166 = scmp.eq.s32.totalorder %s23, 1
      %p167 = scmp.ne.s32.totalorder %s162, %s164
      %p168 = scmp.eq.s32.totalorder %s23, 0
      %p169 = por %p167, %p168
      %p170 = scmp.ne.s32.totalorder %s162, %s164
      %p171 = scmp.eq.s32.totalorder %s28, 1
      %p172 = por %p170, %p171
      %p173 = scmp.ne.s32.totalorder %s164, %s165
      %p174 = scmp.eq.s32.totalorder %s28, 0
      %p175 = por %p173, %p174
      %p176 = scmp.ne.s32.totalorder %s164, %s165
      %p177 = scmp.eq.s32.totalorder %s29, 1
      %p178 = por %p176, %p177
      %p180 = scmp.ne.s32.totalorder %s165, %s179
      %p181 = scmp.eq.s32.totalorder %s29, 0
      %p182 = por %p180, %p181
      %s184 = sadd.s32 %s183, 1
      %p187 = scmp.eq.s32.totalorder %s23, 1
      %p188 = scmp.ne.s32.totalorder %s183, %s185
      %p189 = scmp.eq.s32.totalorder %s23, 0
      %p190 = por %p188, %p189
      %p191 = scmp.ne.s32.totalorder %s183, %s185
      %p192 = scmp.eq.s32.totalorder %s28, 1
      %p193 = por %p191, %p192
      %p194 = scmp.ne.s32.totalorder %s185, %s186
      %p195 = scmp.eq.s32.totalorder %s28, 0
      %p196 = por %p194, %p195
      %p197 = scmp.ne.s32.totalorder %s185, %s186
      %p198 = scmp.eq.s32.totalorder %s29, 1
      %p199 = por %p197, %p198
      %p201 = scmp.ne.s32.totalorder %s186, %s200
      %p202 = scmp.eq.s32.totalorder %s29, 0
      %p203 = por %p201, %p202
      %s205 = sadd.s32 %s204, 1
      %p208 = scmp.eq.s32.totalorder %s23, 1
      %p209 = scmp.ne.s32.totalorder %s204, %s206
      %p210 = scmp.eq.s32.totalorder %s23, 0
      %p211 = por %p209, %p210
      %p212 = scmp.ne.s32.totalorder %s204, %s206
      %p213 = scmp.eq.s32.totalorder %s28, 1
      %p214 = por %p212, %p213
      %p215 = scmp.ne.s32.totalorder %s206, %s207
      %p216 = scmp.eq.s32.totalorder %s28, 0
      %p217 = por %p215, %p216
      %p218 = scmp.ne.s32.totalorder %s206, %s207
      %p219 = scmp.eq.s32.totalorder %s29, 1
      %p220 = por %p218, %p219
      %p222 = scmp.ne.s32.totalorder %s207, %s221
      %p223 = scmp.eq.s32.totalorder %s29, 0
      %p224 = por %p222, %p223
      %s226 = sadd.s32 %s225, 1
      %p229 = scmp.eq.s32.totalorder %s23, 1
      %p230 = scmp.ne.s32.totalorder %s225, %s227
      %p231 = scmp.eq.s32.totalorder %s23, 0
      %p232 = por %p230, %p231
      %p233 = scmp.ne.s32.totalorder %s225, %s227
      %p234 = scmp.eq.s32.totalorder %s28, 1
      %p235 = por %p233, %p234
      %p236 = scmp.ne.s32.totalorder %s227, %s228
      %p237 = scmp.eq.s32.totalorder %s28, 0
      %p238 = por %p236, %p237
      %p239 = scmp.ne.s32.totalorder %s227, %s228
      %p240 = scmp.eq.s32.totalorder %s29, 1
      %p241 = por %p239, %p240
      %p243 = scmp.ne.s32.totalorder %s228, %s242
      %p244 = scmp.eq.s32.totalorder %s29, 0
      %p245 = por %p243, %p244
      %s247 = sadd.s32 %s246, 1
      %p250 = scmp.eq.s32.totalorder %s23, 1
      %p251 = scmp.ne.s32.totalorder %s246, %s248
      %p252 = scmp.eq.s32.totalorder %s23, 0
      %p253 = por %p251, %p252
      %p254 = scmp.ne.s32.totalorder %s246, %s248
      %p255 = scmp.eq.s32.totalorder %s28, 1
      %p256 = por %p254, %p255
      %p257 = scmp.ne.s32.totalorder %s248, %s249
      %p258 = scmp.eq.s32.totalorder %s28, 0
      %p259 = por %p257, %p258
      %p260 = scmp.ne.s32.totalorder %s248, %s249
      %p261 = scmp.eq.s32.totalorder %s29, 1
      %p262 = por %p260, %p261
      %p264 = scmp.ne.s32.totalorder %s249, %s263
      %p265 = scmp.eq.s32.totalorder %s29, 0
      %p266 = por %p264, %p265
      %s268 = sadd.s32 %s267, 1
      %p271 = scmp.eq.s32.totalorder %s23, 1
      %p272 = scmp.ne.s32.totalorder %s267, %s269
      %p273 = scmp.eq.s32.totalorder %s23, 0
      %p274 = por %p272, %p273
      %p275 = scmp.ne.s32.totalorder %s267, %s269
      %p276 = scmp.eq.s32.totalorder %s28, 1
      %p277 = por %p275, %p276
      %p278 = scmp.ne.s32.totalorder %s269, %s270
      %p279 = scmp.eq.s32.totalorder %s28, 0
      %p280 = por %p278, %p279
      %p281 = scmp.ne.s32.totalorder %s269, %s270
      %p282 = scmp.eq.s32.totalorder %s29, 1
      %p283 = por %p281, %p282
      %p285 = scmp.ne.s32.totalorder %s270, %s284
      %p286 = scmp.eq.s32.totalorder %s29, 0
      %p287 = por %p285, %p286
      %s289 = sadd.s32 %s288, 1
      %p292 = scmp.eq.s32.totalorder %s23, 1
      %p293 = scmp.ne.s32.totalorder %s288, %s290
      %p294 = scmp.eq.s32.totalorder %s23, 0
      %p295 = por %p293, %p294
      %p296 = scmp.ne.s32.totalorder %s288, %s290
      %p297 = scmp.eq.s32.totalorder %s28, 1
      %p298 = por %p296, %p297
      %p299 = scmp.ne.s32.totalorder %s290, %s291
      %p300 = scmp.eq.s32.totalorder %s28, 0
      %p301 = por %p299, %p300
      %p302 = scmp.ne.s32.totalorder %s290, %s291
      %p303 = scmp.eq.s32.totalorder %s29, 1
      %p304 = por %p302, %p303
      %p306 = scmp.ne.s32.totalorder %s291, %s305
      %p307 = scmp.eq.s32.totalorder %s29, 0
      %p308 = por %p306, %p307
      %s309 = ssub.s32 %s23, %s30
      %p310 = scmp.eq.s32.totalorder %s309, 0
      %s312 = sadd.s32 %s311, 1
      %s313 = scalar_select %p310, %s311, %s312
      %p316 = pneg %p310
      %p317 = scmp.eq.s32.totalorder %s23, 1
      %p318 = por %p316, %p317
      %p319 = scmp.ne.s32.totalorder %s311, %s314
      %p320 = scmp.eq.s32.totalorder %s23, 0
      %p321 = por %p319, %p320
      %p322 = scmp.ne.s32.totalorder %s311, %s314
      %p323 = scmp.eq.s32.totalorder %s28, 1
      %p324 = por %p322, %p323
      %p325 = scmp.ne.s32.totalorder %s314, %s315
      %p326 = scmp.eq.s32.totalorder %s28, 0
      %p327 = por %p325, %p326
      %p328 = scmp.ne.s32.totalorder %s314, %s315
      %p329 = scmp.eq.s32.totalorder %s29, 1
      %p330 = por %p328, %p329
      %p332 = scmp.ne.s32.totalorder %s315, %s331
      %p333 = scmp.eq.s32.totalorder %s29, 0
      %p334 = por %p332, %p333
      %p335 = scmp.le.s32.totalorder 1, %s23
      %p336 = scmp.lt.s32.totalorder %s23, 3
      %p337 = pnand %p335, %p336
      %p338 = pneg %p337
      // Predicated region
      $region9: #{lenet5_forward.1} parent=5 // pred_check
        _
      $region10: #{lenet5_forward.1} parent=5 // pred_check_branch
        %340 = sbr.rel (%p337) target = $region12
      $region11: #{lenet5_forward.1} parent=5 // pred_region
        %s341 = ssub.s32 %s23, 1
        // Predicated region
        $region13: #{lenet5_forward.1} parent=11 // pred_check
          %p342 = pneg %p70
        $region14: #{lenet5_forward.1} parent=11 // pred_check_branch
          %344 = sbr.rel (%p342) target = $region16
        $region15: #{lenet5_forward.1} parent=11 // pred_region
          _
        $region16: #{lenet5_forward.1} parent=11 // pred_fallthru
          _
        // Predicated region
        $region17: #{lenet5_forward.1} parent=11 // pred_check
          %p345 = pneg %p91
        $region18: #{lenet5_forward.1} parent=11 // pred_check_branch
          %347 = sbr.rel (%p345) target = $region20
        $region19: #{lenet5_forward.1} parent=11 // pred_region
          _
        $region20: #{lenet5_forward.1} parent=11 // pred_fallthru
          _
        // Predicated region
        $region21: #{lenet5_forward.1} parent=11 // pred_check
          %p348 = pneg %p112
        $region22: #{lenet5_forward.1} parent=11 // pred_check_branch
          %350 = sbr.rel (%p348) target = $region24
        $region23: #{lenet5_forward.1} parent=11 // pred_region
          _
        $region24: #{lenet5_forward.1} parent=11 // pred_fallthru
          _
        // Predicated region
        $region25: #{lenet5_forward.1} parent=11 // pred_check
          %p351 = pneg %p133
        $region26: #{lenet5_forward.1} parent=11 // pred_check_branch
          %353 = sbr.rel (%p351) target = $region28
        $region27: #{lenet5_forward.1} parent=11 // pred_region
          _
        $region28: #{lenet5_forward.1} parent=11 // pred_fallthru
          _
        // Predicated region
        $region29: #{lenet5_forward.1} parent=11 // pred_check
          %p354 = pneg %p154
        $region30: #{lenet5_forward.1} parent=11 // pred_check_branch
          %356 = sbr.rel (%p354) target = $region32
        $region31: #{lenet5_forward.1} parent=11 // pred_region
          _
        $region32: #{lenet5_forward.1} parent=11 // pred_fallthru
          _
        // Predicated region
        $region33: #{lenet5_forward.1} parent=11 // pred_check
          %p357 = pneg %p175
        $region34: #{lenet5_forward.1} parent=11 // pred_check_branch
          %359 = sbr.rel (%p357) target = $region36
        $region35: #{lenet5_forward.1} parent=11 // pred_region
          _
        $region36: #{lenet5_forward.1} parent=11 // pred_fallthru
          _
        // Predicated region
        $region37: #{lenet5_forward.1} parent=11 // pred_check
          %p360 = pneg %p196
        $region38: #{lenet5_forward.1} parent=11 // pred_check_branch
          %362 = sbr.rel (%p360) target = $region40
        $region39: #{lenet5_forward.1} parent=11 // pred_region
          _
        $region40: #{lenet5_forward.1} parent=11 // pred_fallthru
          _
        // Predicated region
        $region41: #{lenet5_forward.1} parent=11 // pred_check
          %p363 = pneg %p217
        $region42: #{lenet5_forward.1} parent=11 // pred_check_branch
          %365 = sbr.rel (%p363) target = $region44
        $region43: #{lenet5_forward.1} parent=11 // pred_region
          _
        $region44: #{lenet5_forward.1} parent=11 // pred_fallthru
          _
        // Predicated region
        $region45: #{lenet5_forward.1} parent=11 // pred_check
          %p366 = pneg %p238
        $region46: #{lenet5_forward.1} parent=11 // pred_check_branch
          %368 = sbr.rel (%p366) target = $region48
        $region47: #{lenet5_forward.1} parent=11 // pred_region
          _
        $region48: #{lenet5_forward.1} parent=11 // pred_fallthru
          _
        // Predicated region
        $region49: #{lenet5_forward.1} parent=11 // pred_check
          %p369 = pneg %p259
        $region50: #{lenet5_forward.1} parent=11 // pred_check_branch
          %371 = sbr.rel (%p369) target = $region52
        $region51: #{lenet5_forward.1} parent=11 // pred_region
          _
        $region52: #{lenet5_forward.1} parent=11 // pred_fallthru
          _
        // Predicated region
        $region53: #{lenet5_forward.1} parent=11 // pred_check
          %p372 = pneg %p280
        $region54: #{lenet5_forward.1} parent=11 // pred_check_branch
          %374 = sbr.rel (%p372) target = $region56
        $region55: #{lenet5_forward.1} parent=11 // pred_region
          %s376 = ssub.s32 2048, 2048
          %377 = vsyncadd [#allocation3], %s376
          %s378 = sshll.u32 [#allocation2], 4
          %s379 = int_to_ptr.vmem [resolvable:$true] %s378
          %384 = dma.hbm_to_vmem [thread:$0]  %s11, 2048, %s379, [#allocation3], 128, 128, 8
        $region56: #{lenet5_forward.1} parent=11 // pred_fallthru
          _
        // Predicated region
        $region57: #{lenet5_forward.1} parent=11 // pred_check
          %p385 = pneg %p301
        $region58: #{lenet5_forward.1} parent=11 // pred_check_branch
          %387 = sbr.rel (%p385) target = $region60
        $region59: #{lenet5_forward.1} parent=11 // pred_region
          _
        $region60: #{lenet5_forward.1} parent=11 // pred_fallthru
          _
      $region12: #{lenet5_forward.1} parent=5 // pred_fallthru
        _
      %p388 = scmp.lt.s32.totalorder %s23, 2
      // Predicated region
      $region61: #{lenet5_forward.1} parent=5 // pred_check
        %p389 = pneg %p388
      $region62: #{lenet5_forward.1} parent=5 // pred_check_branch
        %391 = sbr.rel (%p389) target = $region64
      $region63: #{lenet5_forward.1} parent=5 // pred_region
        // Predicated region
        $region65: #{lenet5_forward.1} parent=63 // pred_check
          %p392 = pneg %p43
        $region66: #{lenet5_forward.1} parent=63 // pred_check_branch
          %394 = sbr.rel (%p392) target = $region68
        $region67: #{lenet5_forward.1} parent=63 // pred_region
          %p395 = scmp.lt.s32.totalorder %s23, 1
          %s396 = scalar_select %p395, %s23, 1
          %s397 = smul.addr %s396, 4
          %s398 = smul.addr %s397, 8
          %s399 = scalar_lea.vmem %s0, %s398
        $region68: #{lenet5_forward.1} parent=63 // pred_fallthru
          _
      $region64: #{lenet5_forward.1} parent=5 // pred_fallthru
        _
      %p400 = scmp.le.s32.totalorder 1, %s23
      %p401 = scmp.lt.s32.totalorder %s23, 3
      %p402 = pnand %p400, %p401
      %p403 = pneg %p402
      // Predicated region
      $region69: #{lenet5_forward.1} parent=5 // pred_check
        _
      $region70: #{lenet5_forward.1} parent=5 // pred_check_branch
        %405 = sbr.rel (%p402) target = $region72
      $region71: #{lenet5_forward.1} parent=5 // pred_region
        %s406 = ssub.s32 %s23, 1
        // Predicated region
        $region73: #{lenet5_forward.1} parent=71 // pred_check
          %p407 = pneg %p280
        $region74: #{lenet5_forward.1} parent=71 // pred_check_branch
          %409 = sbr.rel (%p407) target = $region76
        $region75: #{lenet5_forward.1} parent=71 // pred_region
          %410 = dma.done [#allocation3], 2048
        $region76: #{lenet5_forward.1} parent=71 // pred_fallthru
          _
        %p411 = scmp.lt.s32.totalorder %s28, 1
        %s412 = scalar_select %p411, %s28, 1
        %s413 = smul.addr %s412, 4
        %s414 = smul.addr %s413, 8
        %s415 = scalar_lea.vmem %s0, %s414
        %p416 = pneg %p49
        %p417 = pneg %p46
        %p418 = pneg %p70
        %p419 = pneg %p67
        %p420 = pneg %p91
        %p421 = pneg %p88
        %p422 = pneg %p112
        %p423 = pneg %p109
        %p424 = pneg %p133
        %p425 = pneg %p130
        %p426 = pneg %p154
        %p427 = pneg %p151
        %p428 = pneg %p175
        %p429 = pneg %p172
        %p430 = pneg %p196
        %p431 = pneg %p193
        %p432 = pneg %p217
        %p433 = pneg %p214
        %p434 = pneg %p238
        %p435 = pneg %p235
        %p436 = pneg %p259
        %p437 = pneg %p256
        %p438 = pneg %p280
        %p439 = pneg %p277
        %p440 = pneg %p301
        %p441 = pneg %p298
        %p442 = pneg %p327
        %p443 = pneg %p324
        %s444 = sand.u32 %s314, 1
        %s445 = scalar_lea.sflag [#allocation4], %s444
        %s446 = sand.u32 %s314, 1
        %s447 = scalar_lea.vmem [#allocation5], %s446
        %p448 = scmp.lt.s32.totalorder %s28, 1
        %s449 = scalar_select %p448, %s28, 1
        %s450 = smul.addr %s449, 4
        %s451 = smul.addr %s450, 8
        %s452 = scalar_lea.vmem %s0, %s451
        %v453 = vld [vmem:[%s452] sm:$0xff]
        %v454 = vld [vmem:[%s452 + $0x8] sm:$0xff]
        %v455 = vld [vmem:[%s452 + $0x10] sm:$0xff]
        %v456 = vld [vmem:[%s452 + $0x18] sm:$0xff]
        %vm461 = vcmask 1046528
        %v462 = vrot.slane %v453, 1
        %v463 = vrot.slane %v454, 1
        %v464 = vsel %vm461, %v462, %v463
        %v465 = vrot.slane %v455, 1
        %v466 = vsel %vm461, %v463, %v465
        %v467 = vrot.slane %v456, 1
        %v468 = vsel %vm461, %v465, %v467
        %469 = vrot.lane.b32.xlu0 %v464, 32
        %v470 = vpop.permute.xlu0 %469
        %471 = vrot.lane.b32.xlu0 %v466, 32
        %v472 = vpop.permute.xlu0 %471
        %473 = vrot.lane.b32.xlu0 %v468, 32
        %v474 = vpop.permute.xlu0 %473
        %475 = vrot.lane.b32.xlu0 %v467, 32
        %v476 = vpop.permute.xlu0 %475
        %vm481 = vcmask 1045504
        %v482 = vrot.slane %v453, 2
        %v483 = vrot.slane %v454, 2
        %v484 = vsel %vm481, %v482, %v483
        %v485 = vrot.slane %v455, 2
        %v486 = vsel %vm481, %v483, %v485
        %v487 = vrot.slane %v456, 2
        %v488 = vsel %vm481, %v485, %v487
        %489 = vrot.lane.b32.xlu0 %v484, 64
        %v490 = vpop.permute.xlu0 %489
        %491 = vrot.lane.b32.xlu0 %v486, 64
        %v492 = vpop.permute.xlu0 %491
        %493 = vrot.lane.b32.xlu0 %v488, 64
        %v494 = vpop.permute.xlu0 %493
        %495 = vrot.lane.b32.xlu0 %v487, 64
        %v496 = vpop.permute.xlu0 %495
        %vm501 = vcmask 1044480
        %v502 = vrot.slane %v453, 3
        %v503 = vrot.slane %v454, 3
        %v504 = vsel %vm501, %v502, %v503
        %v505 = vrot.slane %v455, 3
        %v506 = vsel %vm501, %v503, %v505
        %v507 = vrot.slane %v456, 3
        %v508 = vsel %vm501, %v505, %v507
        %509 = vrot.lane.b32.xlu0 %v504, 96
        %v510 = vpop.permute.xlu0 %509
        %511 = vrot.lane.b32.xlu0 %v506, 96
        %v512 = vpop.permute.xlu0 %511
        %513 = vrot.lane.b32.xlu0 %v508, 96
        %v514 = vpop.permute.xlu0 %513
        %515 = vrot.lane.b32.xlu0 %v507, 96
        %v516 = vpop.permute.xlu0 %515
        %vm521 = vcmask 1043456
        %v522 = vrot.slane %v453, 4
        %v523 = vrot.slane %v454, 4
        %v524 = vsel %vm521, %v522, %v523
        %v525 = vrot.slane %v455, 4
        %v526 = vsel %vm521, %v523, %v525
        %v527 = vrot.slane %v456, 4
        %v528 = vsel %vm521, %v525, %v527
        %vm532 = vcmask 261120
        %v533 = vsel %vm532, %v453, %v470
        %v534 = vsel %vm532, %v454, %v472
        %v535 = vsel %vm532, %v455, %v474
        %v536 = vsel %vm532, %v456, %v476
        %vm537 = vcmask 523264
        %v538 = vsel %vm537, %v533, %v490
        %v539 = vsel %vm537, %v534, %v492
        %v540 = vsel %vm537, %v535, %v494
        %v541 = vsel %vm537, %v536, %v496
        %vm542 = vcmask 785408
        %v543 = vsel %vm542, %v538, %v510
        %v544 = vsel %vm542, %v539, %v512
        %v545 = vsel %vm542, %v540, %v514
        %v546 = vsel %vm542, %v541, %v516
        %v547 = vld [vmem:[%s1] sm:$0xff]
        %v548 = vld [vmem:[%s1 + $0x8] sm:$0x3f]
        %vm549 = vcmask 228352
        %v551 = vsel %vm549, %v547, 0
        %v554 = vsel %vm549, %v548, 0
        %v557 = vsel %vm521, %v546, 0
        %v559 = vsel %vm521, %v527, 0
        %561 = vmatprep.subr.mxu0 %v524
        %562 = vmatpush1.msra.mxu0 %v543
        %563 = vmatprep.subr.mxu0 %v526
        %564 = vmatpush1.msra.mxu0 %v544
        %565 = vmatprep.subr.mxu0 %v528
        %566 = vmatpush1.msra.mxu0 %v545
        %567 = vmatprep.subr.mxu0 %v559
        %568 = vmatpush1.msra.mxu0 %v557
        %569 = vmatprep.subr.mxu0 0.0
        %570 = vmatpush1.msra.mxu0 0.0
        %571 = vmatprep.subr.mxu0 0.0
        %572 = vmatpush1.msra.mxu0 0.0
        %573 = vmatprep.subr.mxu0 0.0
        %574 = vmatpush1.msra.mxu0 0.0
        %575 = vmatprep.subr.mxu0 0.0
        %576 = vmatpush1.msra.mxu0 0.0
        %577 = vmatprep.subr.mxu0 0.0
        %578 = vmatpush1.msra.mxu0 0.0
        %579 = vmatprep.subr.mxu0 0.0
        %580 = vmatpush1.msra.mxu0 0.0
        %581 = vmatprep.subr.mxu0 0.0
        %582 = vmatpush1.msra.mxu0 0.0
        %583 = vmatprep.subr.mxu0 0.0
        %584 = vmatpush1.msra.mxu0 0.0
        %585 = vmatprep.subr.mxu0 0.0
        %586 = vmatpush1.msra.mxu0 0.0
        %587 = vmatprep.subr.mxu0 0.0
        %588 = vmatpush1.msra.mxu0 0.0
        %589 = vmatprep.subr.mxu0 0.0
        %590 = vmatpush1.msra.mxu0 0.0
        %591 = vmatprep.subr.mxu0 0.0
        %592 = vmatpush1.msra.mxu0 0.0
        %593 = vmatprep.subr.mxu0 0.0
        %594 = vmatpush1.msra.mxu0 0.0
        %595 = vmatprep.subr.mxu0 0.0
        %596 = vmatpush1.msra.mxu0 0.0
        %597 = vmatprep.subr.mxu0 0.0
        %598 = vmatpush1.msra.mxu0 0.0
        %599 = vmatprep.subr.mxu0 0.0
        %600 = vmatpush1.msra.mxu0 0.0
        %601 = vmatprep.subr.mxu0 0.0
        %602 = vmatpush1.msra.mxu0 0.0
        %603 = vmatprep.subr.mxu0 0.0
        %604 = vmatpush1.msra.mxu0 0.0
        %605 = vmatprep.subr.mxu0 0.0
        %606 = vmatpush1.msra.mxu0 0.0
        %607 = vmatprep.subr.mxu0 0.0
        %608 = vmatpush1.msra.mxu0 0.0
        %609 = vmatprep.subr.mxu0 0.0
        %610 = vmatpush1.msra.mxu0 0.0
        %611 = vmatprep.subr.mxu0 0.0
        %612 = vmatpush1.msra.mxu0 0.0
        %613 = vmatprep.subr.mxu0 0.0
        %614 = vmatpush1.msra.mxu0 0.0
        %615 = vmatprep.subr.mxu0 0.0
        %616 = vmatpush1.msra.mxu0 0.0
        %617 = vmatprep.subr.mxu0 0.0
        %618 = vmatpush1.msra.mxu0 0.0
        %619 = vmatprep.subr.mxu0 0.0
        %620 = vmatpush1.msra.mxu0 0.0
        %621 = vmatprep.subr.mxu0 0.0
        %622 = vmatpush1.msra.mxu0 0.0
        %623 = vmatprep.subr.mxu0 0.0
        %624 = vmatpush1.msra.mxu0 0.0
        %625 = vmatprep.mubr.f32.mxu0 0.0
        %626 = vmatmul.mubr.f32.gmra.mrb[0].mxu0 %v551
        %v627 = vpop.f32.mrb[0].mxu0
        %v628 = vadd.f32 0.0, %v627
        %v629 = vpop.f32.mrb[0].mxu0
        %v630 = vadd.f32 0.0, %v629
        %631 = vmatprep.mubr.f32.mxu0 0.0
        %632 = vmatmul.mubr.f32.gmra.mrb[0].mxu0 %v554
        %v633 = vpop.f32.mrb[0].mxu0
        %v634 = vadd.f32 0.0, %v633
        %v635 = vpop.f32.mrb[0].mxu0
        %v636 = vadd.f32 0.0, %v635
        %637 = vdwg.mxu0
        %v638 = vld [vmem:[%s3] sm:$0xff]
        %v639 = vld [vmem:[%s3 + $0x8] sm:$0xff]
        %v640 = vld [vmem:[%s3 + $0x10] sm:$0xff]
        %v641 = vld [vmem:[%s3 + $0x18] sm:$0xff]
        %v642 = vld [vmem:[%s3 + $0x20] sm:$0xff]
        %v643 = vld [vmem:[%s3 + $0x28] sm:$0xff]
        %v644 = vld [vmem:[%s3 + $0x30] sm:$0xff]
        %v645 = vld [vmem:[%s3 + $0x38] sm:$0xff]
        %v646 = vld [vmem:[%s3 + $0x40] sm:$0xff]
        %v647 = vld [vmem:[%s3 + $0x48] sm:$0xff]
        %v648 = vld [vmem:[%s3 + $0x50] sm:$0xff]
        %v649 = vld [vmem:[%s3 + $0x58] sm:$0xff]
        %v650 = vld [vmem:[%s3 + $0x60] sm:$0xff]
        %v651 = vld [vmem:[%s3 + $0x68] sm:$0xff]
        %v652 = vld [vmem:[%s3 + $0x70] sm:$0xff]
        %v653 = vld [vmem:[%s3 + $0x78] sm:$0xff]
        %v654 = vld [vmem:[%s3 + $0x80] sm:$0xff]
        %v655 = vld [vmem:[%s3 + $0x88] sm:$0xff]
        %v656 = vld [vmem:[%s3 + $0x90] sm:$0xff]
        %v657 = vld [vmem:[%s3 + $0x98] sm:$0xff]
        %v658 = vld [vmem:[%s4] sm:$0x1]
        %v660 = vlaneseq
        %v661 = vshrl.u32 %v660, 7
        %v662 = vsub.s32 0, %v661
        %v663 = vrot.slane %v658, %v662
        %v666 = vsel %vm532, %v630, 0
        %v669 = vsel %vm532, %v636, 0
        %671 = vmatprep.subr.mxu0 0.0
        %672 = vmatpush1.msra.mxu0 %v638
        %673 = vmatprep.subr.mxu0 0.0
        %674 = vmatpush1.msra.mxu0 %v639
        %675 = vmatprep.subr.mxu0 0.0
        %676 = vmatpush1.msra.mxu0 %v640
        %677 = vmatprep.subr.mxu0 0.0
        %678 = vmatpush1.msra.mxu0 %v641
        %679 = vmatprep.subr.mxu0 0.0
        %680 = vmatpush1.msra.mxu0 %v642
        %681 = vmatprep.subr.mxu0 0.0
        %682 = vmatpush1.msra.mxu0 %v643
        %683 = vmatprep.subr.mxu0 0.0
        %684 = vmatpush1.msra.mxu0 %v644
        %685 = vmatprep.subr.mxu0 0.0
        %686 = vmatpush1.msra.mxu0 %v645
        %687 = vmatprep.subr.mxu0 0.0
        %688 = vmatpush1.msra.mxu0 %v646
        %689 = vmatprep.subr.mxu0 0.0
        %690 = vmatpush1.msra.mxu0 %v647
        %691 = vmatprep.subr.mxu0 0.0
        %692 = vmatpush1.msra.mxu0 %v648
        %693 = vmatprep.subr.mxu0 0.0
        %694 = vmatpush1.msra.mxu0 %v649
        %695 = vmatprep.subr.mxu0 0.0
        %696 = vmatpush1.msra.mxu0 %v650
        %697 = vmatprep.subr.mxu0 0.0
        %698 = vmatpush1.msra.mxu0 %v651
        %699 = vmatprep.subr.mxu0 0.0
        %700 = vmatpush1.msra.mxu0 %v652
        %701 = vmatprep.subr.mxu0 0.0
        %702 = vmatpush1.msra.mxu0 %v653
        %703 = vmatprep.subr.mxu0 0.0
        %704 = vmatpush1.msra.mxu0 %v654
        %705 = vmatprep.subr.mxu0 0.0
        %706 = vmatpush1.msra.mxu0 %v655
        %707 = vmatprep.subr.mxu0 0.0
        %708 = vmatpush1.msra.mxu0 %v656
        %709 = vmatprep.subr.mxu0 0.0
        %710 = vmatpush1.msra.mxu0 %v657
        %711 = vmatprep.subr.mxu0 0.0
        %712 = vmatpush1.msra.mxu0 0.0
        %713 = vmatprep.subr.mxu0 0.0
        %714 = vmatpush1.msra.mxu0 0.0
        %715 = vmatprep.subr.mxu0 0.0
        %716 = vmatpush1.msra.mxu0 0.0
        %717 = vmatprep.subr.mxu0 0.0
        %718 = vmatpush1.msra.mxu0 0.0
        %719 = vmatprep.subr.mxu0 0.0
        %720 = vmatpush1.msra.mxu0 0.0
        %721 = vmatprep.subr.mxu0 0.0
        %722 = vmatpush1.msra.mxu0 0.0
        %723 = vmatprep.subr.mxu0 0.0
        %724 = vmatpush1.msra.mxu0 0.0
        %725 = vmatprep.subr.mxu0 0.0
        %726 = vmatpush1.msra.mxu0 0.0
        %727 = vmatprep.subr.mxu0 0.0
        %728 = vmatpush1.msra.mxu0 0.0
        %729 = vmatprep.subr.mxu0 0.0
        %730 = vmatpush1.msra.mxu0 0.0
        %731 = vmatprep.subr.mxu0 0.0
        %732 = vmatpush1.msra.mxu0 0.0
        %733 = vmatprep.subr.mxu0 0.0
        %734 = vmatpush1.msra.mxu0 0.0
        %735 = vmatprep.mubr.f32.mxu0 %v666
        %736 = vmatmul.mubr.f32.gmra.mrb[0].mxu0 %v628
        %v737 = vpop.f32.mrb[0].mxu0
        %v738 = vadd.f32 %v663, %v737
        %v739 = vpop.f32.mrb[0].mxu0
        %740 = vmatprep.mubr.f32.mxu0 %v669
        %741 = vmatmul.mubr.f32.gmra.mrb[0].mxu0 %v634
        %v742 = vpop.f32.mrb[0].mxu0
        %v743 = vadd.f32 %v663, %v742
        %v744 = vpop.f32.mrb[0].mxu0
        %745 = vdwg.mxu0
        %v748 = vrot.slane %v738, 1
        %v749 = vrot.slane %v743, 1
        %v750 = vsel %vm461, %v748, %v749
        %751 = vrot.lane.b32.xlu0 %v750, 14
        %v752 = vpop.permute.xlu0 %751
        %753 = vrot.lane.b32.xlu0 %v749, 14
        %v754 = vpop.permute.xlu0 %753
        %v757 = vrot.slane %v738, 2
        %v758 = vrot.slane %v743, 2
        %v759 = vsel %vm481, %v757, %v758
        %760 = vrot.lane.b32.xlu0 %v759, 28
        %v761 = vpop.permute.xlu0 %760
        %762 = vrot.lane.b32.xlu0 %v758, 28
        %v763 = vpop.permute.xlu0 %762
        %v766 = vrot.slane %v738, 3
        %v767 = vrot.slane %v743, 3
        %v768 = vsel %vm501, %v766, %v767
        %769 = vrot.lane.b32.xlu0 %v768, 42
        %v770 = vpop.permute.xlu0 %769
        %771 = vrot.lane.b32.xlu0 %v767, 42
        %v772 = vpop.permute.xlu0 %771
        %v775 = vrot.slane %v738, 4
        %v776 = vrot.slane %v743, 4
        %v777 = vsel %vm521, %v775, %v776
        %778 = vrot.lane.b32.xlu0 %v777, 56
        %v779 = vpop.permute.xlu0 %778
        %780 = vrot.lane.b32.xlu0 %v776, 56
        %v781 = vpop.permute.xlu0 %780
        %784 = vrot.lane.b32.xlu0 %v738, 56
        %v785 = vpop.permute.xlu0 %784
        %786 = vrot.lane.b32.xlu0 %v743, 56
        %v787 = vpop.permute.xlu0 %786
        %790 = vrot.lane.b32.xlu0 %v750, 70
        %v791 = vpop.permute.xlu0 %790
        %792 = vrot.lane.b32.xlu0 %v749, 70
        %v793 = vpop.permute.xlu0 %792
        %796 = vrot.lane.b32.xlu0 %v759, 84
        %v797 = vpop.permute.xlu0 %796
        %798 = vrot.lane.b32.xlu0 %v758, 84
        %v799 = vpop.permute.xlu0 %798
        %802 = vrot.lane.b32.xlu0 %v768, 98
        %v803 = vpop.permute.xlu0 %802
        %804 = vrot.lane.b32.xlu0 %v767, 98
        %v805 = vpop.permute.xlu0 %804
        %808 = vrot.lane.b32.xlu0 %v777, 112
        %v809 = vpop.permute.xlu0 %808
        %810 = vrot.lane.b32.xlu0 %v776, 112
        %v811 = vpop.permute.xlu0 %810
        %814 = vrot.lane.b32.xlu0 %v738, 112
        %v815 = vpop.permute.xlu0 %814
        %816 = vrot.lane.b32.xlu0 %v743, 112
        %v817 = vpop.permute.xlu0 %816
        %820 = vrot.lane.b32.xlu0 %v750, 126
        %v821 = vpop.permute.xlu0 %820
        %822 = vrot.lane.b32.xlu0 %v749, 126
        %v823 = vpop.permute.xlu0 %822
        %826 = vrot.lane.b32.xlu0 %v759, 12
        %v827 = vpop.permute.xlu0 %826
        %828 = vrot.lane.b32.xlu0 %v758, 12
        %v829 = vpop.permute.xlu0 %828
        %832 = vrot.lane.b32.xlu0 %v768, 26
        %v833 = vpop.permute.xlu0 %832
        %834 = vrot.lane.b32.xlu0 %v767, 26
        %v835 = vpop.permute.xlu0 %834
        %838 = vrot.lane.b32.xlu0 %v777, 40
        %v839 = vpop.permute.xlu0 %838
        %840 = vrot.lane.b32.xlu0 %v776, 40
        %v841 = vpop.permute.xlu0 %840
        %844 = vrot.lane.b32.xlu0 %v738, 40
        %v845 = vpop.permute.xlu0 %844
        %846 = vrot.lane.b32.xlu0 %v743, 40
        %v847 = vpop.permute.xlu0 %846
        %vm850 = vcmask 113664
        %v851 = vsel %vm850, %v738, %v752
        %v852 = vsel %vm850, %v743, %v754
        %v853 = vsel %vm549, %v851, %v761
        %v854 = vsel %vm549, %v852, %v763
        %vm855 = vcmask 343040
        %v856 = vsel %vm855, %v853, %v770
        %v857 = vsel %vm855, %v854, %v772
        %vm858 = vcmask 457728
        %v859 = vsel %vm858, %v856, %v779
        %v860 = vsel %vm858, %v857, %v781
        %vm861 = vcmask 572416
        %v862 = vsel %vm861, %v859, %v785
        %v863 = vsel %vm861, %v860, %v787
        %vm864 = vcmask 687104
        %v865 = vsel %vm864, %v862, %v791
        %v866 = vsel %vm864, %v863, %v793
        %vm867 = vcmask 801792
        %v868 = vsel %vm867, %v865, %v797
        %v869 = vsel %vm867, %v866, %v799
        %vm870 = vcmask 916480
        %v871 = vsel %vm870, %v868, %v803
        %v872 = vsel %vm870, %v869, %v805
        %vm873 = vcmask 1031168
        %v874 = vsel %vm873, %v871, %v809
        %v875 = vsel %vm873, %v872, %v811
        %vm876 = vcmask 97280
        %v877 = vsel %vm876, %v809, %v815
        %v878 = vsel %vm876, %v811, %v817
        %vm879 = vcmask 211968
        %v880 = vsel %vm879, %v877, %v821
        %v881 = vsel %vm879, %v878, %v823
        %vm882 = vcmask 326656
        %v883 = vsel %vm882, %v880, %v827
        %v884 = vsel %vm882, %v881, %v829
        %vm885 = vcmask 441344
        %v886 = vsel %vm885, %v883, %v833
        %v887 = vsel %vm885, %v884, %v835
        %vm888 = vcmask 556032
        %v889 = vsel %vm888, %v886, %v839
        %v890 = vsel %vm888, %v887, %v841
        %vm891 = vcmask 670720
        %v892 = vsel %vm891, %v889, %v845
        %v893 = vsel %vm891, %v890, %v847
        %894 = vrot.lane.b32.xlu0 %v738, 86
        %v895 = vpop.permute.xlu0 %894
        %896 = vrot.lane.b32.xlu0 %v743, 86
        %v897 = vpop.permute.xlu0 %896
        %900 = vrot.lane.b32.xlu0 %v750, 100
        %v901 = vpop.permute.xlu0 %900
        %902 = vrot.lane.b32.xlu0 %v749, 100
        %v903 = vpop.permute.xlu0 %902
        %906 = vrot.lane.b32.xlu0 %v759, 114
        %v907 = vpop.permute.xlu0 %906
        %908 = vrot.lane.b32.xlu0 %v758, 114
        %v909 = vpop.permute.xlu0 %908
        %vm914 = vcmask 1040384
        %v915 = vrot.slane %v738, 7
        %v916 = vrot.slane %v743, 7
        %v917 = vsel %vm914, %v915, %v916
        %920 = vrot.lane.b32.xlu0 %v738, 14
        %v921 = vpop.permute.xlu0 %920
        %922 = vrot.lane.b32.xlu0 %v743, 14
        %v923 = vpop.permute.xlu0 %922
        %926 = vrot.lane.b32.xlu0 %v750, 28
        %v927 = vpop.permute.xlu0 %926
        %928 = vrot.lane.b32.xlu0 %v749, 28
        %v929 = vpop.permute.xlu0 %928
        %932 = vrot.lane.b32.xlu0 %v759, 42
        %v933 = vpop.permute.xlu0 %932
        %934 = vrot.lane.b32.xlu0 %v758, 42
        %v935 = vpop.permute.xlu0 %934
        %938 = vrot.lane.b32.xlu0 %v768, 56
        %v939 = vpop.permute.xlu0 %938
        %940 = vrot.lane.b32.xlu0 %v767, 56
        %v941 = vpop.permute.xlu0 %940
        %944 = vrot.lane.b32.xlu0 %v915, 56
        %v945 = vpop.permute.xlu0 %944
        %946 = vrot.lane.b32.xlu0 %v917, 56
        %v947 = vpop.permute.xlu0 %946
        %950 = vrot.lane.b32.xlu0 %v738, 70
        %v951 = vpop.permute.xlu0 %950
        %952 = vrot.lane.b32.xlu0 %v743, 70
        %v953 = vpop.permute.xlu0 %952
        %956 = vrot.lane.b32.xlu0 %v750, 84
        %v957 = vpop.permute.xlu0 %956
        %958 = vrot.lane.b32.xlu0 %v749, 84
        %v959 = vpop.permute.xlu0 %958
        %962 = vrot.lane.b32.xlu0 %v759, 98
        %v963 = vpop.permute.xlu0 %962
        %964 = vrot.lane.b32.xlu0 %v758, 98
        %v965 = vpop.permute.xlu0 %964
        %968 = vrot.lane.b32.xlu0 %v768, 112
        %v969 = vpop.permute.xlu0 %968
        %970 = vrot.lane.b32.xlu0 %v767, 112
        %v971 = vpop.permute.xlu0 %970
        %v974 = vsel %vm850, %v895, %v901
        %v975 = vsel %vm850, %v897, %v903
        %v976 = vsel %vm549, %v974, %v907
        %v977 = vsel %vm549, %v975, %v909
        %v978 = vsel %vm855, %v976, %v768
        %v979 = vsel %vm855, %v977, %v767
        %v980 = vsel %vm858, %v978, %v915
        %v981 = vsel %vm858, %v979, %v917
        %v982 = vsel %vm861, %v980, %v921
        %v983 = vsel %vm861, %v981, %v923
        %v984 = vsel %vm864, %v982, %v927
        %v985 = vsel %vm864, %v983, %v929
        %v986 = vsel %vm867, %v984, %v933
        %v987 = vsel %vm867, %v985, %v935
        %v988 = vsel %vm870, %v986, %v939
        %v989 = vsel %vm870, %v987, %v941
        %v990 = vsel %vm873, %v988, %v945
        %v991 = vsel %vm873, %v989, %v947
        %v992 = vsel %vm876, %v945, %v951
        %v993 = vsel %vm876, %v947, %v953
        %v994 = vsel %vm879, %v992, %v957
        %v995 = vsel %vm879, %v993, %v959
        %v996 = vsel %vm882, %v994, %v963
        %v997 = vsel %vm882, %v995, %v965
        %v998 = vsel %vm885, %v996, %v969
        %v999 = vsel %vm885, %v997, %v971
        %v1004 = vrot.slane %v990, 1
        %v1005 = vrot.slane %v991, 1
        %v1006 = vsel %vm461, %v1004, %v1005
        %v1007 = vrot.slane %v998, 1
        %v1008 = vrot.slane %v999, 1
        %v1009 = vsel %vm461, %v1007, %v1008
        %1010 = vrot.lane.b32.xlu0 %v1006, 96
        %v1011 = vpop.permute.xlu0 %1010
        %1012 = vrot.lane.b32.xlu0 %v1009, 96
        %v1013 = vpop.permute.xlu0 %1012
        %1014 = vrot.lane.b32.xlu0 %v1005, 96
        %v1015 = vpop.permute.xlu0 %1014
        %1016 = vrot.lane.b32.xlu0 %v1008, 96
        %v1017 = vpop.permute.xlu0 %1016
        %v1018 = vsel %vm542, %v1011, %v1013
        %v1019 = vsel %vm542, %v1015, %v1017
        %v1024 = vsel %vm542, %v892, %v1011
        %v1025 = vsel %vm542, %v893, %v1015
        %v1026 = vld [vmem:[%s2] sm:$0x1f]
        %vm1027 = vcmask 80896
        %v1029 = vsel %vm1027, %v1026, 0
        %vm1031 = vcmask 1041408
        %v1033 = vsel %vm1031, %v875, 0
        %v1036 = vsel %vm1031, %v1025, 0
        %v1038 = vsel %vm1031, %v1019, 0
        %v1040 = vsel %vm1031, %v1017, 0
        %1042 = vmatprep.subr.mxu0 %v1024
        %1043 = vmatpush1.msra.mxu0 %v874
        %1044 = vmatprep.subr.mxu0 %v1036
        %1045 = vmatpush1.msra.mxu0 %v1033
        %1046 = vmatprep.subr.mxu0 0.0
        %1047 = vmatpush1.msra.mxu0 0.0
        %1048 = vmatprep.subr.mxu0 0.0
        %1049 = vmatpush1.msra.mxu0 0.0
        %1050 = vmatprep.subr.mxu0 0.0
        %1051 = vmatpush1.msra.mxu0 0.0
        %1052 = vmatprep.subr.mxu0 0.0
        %1053 = vmatpush1.msra.mxu0 0.0
        %1054 = vmatprep.subr.mxu0 0.0
        %1055 = vmatpush1.msra.mxu0 0.0
        %1056 = vmatprep.subr.mxu0 0.0
        %1057 = vmatpush1.msra.mxu0 0.0
        %1058 = vmatprep.subr.mxu0 0.0
        %1059 = vmatpush1.msra.mxu0 0.0
        %1060 = vmatprep.subr.mxu0 0.0
        %1061 = vmatpush1.msra.mxu0 0.0
        %1062 = vmatprep.subr.mxu0 0.0
        %1063 = vmatpush1.msra.mxu0 0.0
        %1064 = vmatprep.subr.mxu0 0.0
        %1065 = vmatpush1.msra.mxu0 0.0
        %1066 = vmatprep.subr.mxu0 0.0
        %1067 = vmatpush1.msra.mxu0 0.0
        %1068 = vmatprep.subr.mxu0 0.0
        %1069 = vmatpush1.msra.mxu0 0.0
        %1070 = vmatprep.subr.mxu0 0.0
        %1071 = vmatpush1.msra.mxu0 0.0
        %1072 = vmatprep.subr.mxu0 0.0
        %1073 = vmatpush1.msra.mxu0 0.0
        %1074 = vmatprep.subr.mxu0 0.0
        %1075 = vmatpush1.msra.mxu0 0.0
        %1076 = vmatprep.subr.mxu0 0.0
        %1077 = vmatpush1.msra.mxu0 0.0
        %1078 = vmatprep.subr.mxu0 0.0
        %1079 = vmatpush1.msra.mxu0 0.0
        %1080 = vmatprep.subr.mxu0 0.0
        %1081 = vmatpush1.msra.mxu0 0.0
        %1082 = vmatprep.subr.mxu0 0.0
        %1083 = vmatpush1.msra.mxu0 0.0
        %1084 = vmatprep.subr.mxu0 0.0
        %1085 = vmatpush1.msra.mxu0 0.0
        %1086 = vmatprep.subr.mxu0 0.0
        %1087 = vmatpush1.msra.mxu0 0.0
        %1088 = vmatprep.subr.mxu0 0.0
        %1089 = vmatpush1.msra.mxu0 0.0
        %1090 = vmatprep.subr.mxu0 0.0
        %1091 = vmatpush1.msra.mxu0 0.0
        %1092 = vmatprep.subr.mxu0 0.0
        %1093 = vmatpush1.msra.mxu0 0.0
        %1094 = vmatprep.subr.mxu0 0.0
        %1095 = vmatpush1.msra.mxu0 0.0
        %1096 = vmatprep.subr.mxu0 0.0
        %1097 = vmatpush1.msra.mxu0 0.0
        %1098 = vmatprep.subr.mxu0 0.0
        %1099 = vmatpush1.msra.mxu0 0.0
        %1100 = vmatprep.subr.mxu0 0.0
        %1101 = vmatpush1.msra.mxu0 0.0
        %1102 = vmatprep.subr.mxu0 0.0
        %1103 = vmatpush1.msra.mxu0 0.0
        %1104 = vmatprep.subr.mxu0 0.0
        %1105 = vmatpush1.msra.mxu0 0.0
        %1106 = vmatprep.mubr.f32.mxu0 0.0
        %1107 = vmatmul.mubr.f32.gmra.mrb[0].mxu0 %v1029
        %v1108 = vpop.f32.mrb[0].mxu0
        %v1109 = vadd.f32 0.0, %v1108
        %v1110 = vpop.f32.mrb[0].mxu0
        %v1111 = vadd.f32 0.0, %v1110
        %1112 = vdwg.mxu0
        %1113 = vmatprep.subr.mxu0 %v1013
        %1114 = vmatpush1.msra.mxu0 %v1018
        %1115 = vmatprep.subr.mxu0 %v1040
        %1116 = vmatpush1.msra.mxu0 %v1038
        %1117 = vmatprep.subr.mxu0 0.0
        %1118 = vmatpush1.msra.mxu0 0.0
        %1119 = vmatprep.subr.mxu0 0.0
        %1120 = vmatpush1.msra.mxu0 0.0
        %1121 = vmatprep.subr.mxu0 0.0
        %1122 = vmatpush1.msra.mxu0 0.0
        %1123 = vmatprep.subr.mxu0 0.0
        %1124 = vmatpush1.msra.mxu0 0.0
        %1125 = vmatprep.subr.mxu0 0.0
        %1126 = vmatpush1.msra.mxu0 0.0
        %1127 = vmatprep.subr.mxu0 0.0
        %1128 = vmatpush1.msra.mxu0 0.0
        %1129 = vmatprep.subr.mxu0 0.0
        %1130 = vmatpush1.msra.mxu0 0.0
        %1131 = vmatprep.subr.mxu0 0.0
        %1132 = vmatpush1.msra.mxu0 0.0
        %1133 = vmatprep.subr.mxu0 0.0
        %1134 = vmatpush1.msra.mxu0 0.0
        %1135 = vmatprep.subr.mxu0 0.0
        %1136 = vmatpush1.msra.mxu0 0.0
        %1137 = vmatprep.subr.mxu0 0.0
        %1138 = vmatpush1.msra.mxu0 0.0
        %1139 = vmatprep.subr.mxu0 0.0
        %1140 = vmatpush1.msra.mxu0 0.0
        %1141 = vmatprep.subr.mxu0 0.0
        %1142 = vmatpush1.msra.mxu0 0.0
        %1143 = vmatprep.subr.mxu0 0.0
        %1144 = vmatpush1.msra.mxu0 0.0
        %1145 = vmatprep.subr.mxu0 0.0
        %1146 = vmatpush1.msra.mxu0 0.0
        %1147 = vmatprep.subr.mxu0 0.0
        %1148 = vmatpush1.msra.mxu0 0.0
        %1149 = vmatprep.subr.mxu0 0.0
        %1150 = vmatpush1.msra.mxu0 0.0
        %1151 = vmatprep.subr.mxu0 0.0
        %1152 = vmatpush1.msra.mxu0 0.0
        %1153 = vmatprep.subr.mxu0 0.0
        %1154 = vmatpush1.msra.mxu0 0.0
        %1155 = vmatprep.subr.mxu0 0.0
        %1156 = vmatpush1.msra.mxu0 0.0
        %1157 = vmatprep.subr.mxu0 0.0
        %1158 = vmatpush1.msra.mxu0 0.0
        %1159 = vmatprep.subr.mxu0 0.0
        %1160 = vmatpush1.msra.mxu0 0.0
        %1161 = vmatprep.subr.mxu0 0.0
        %1162 = vmatpush1.msra.mxu0 0.0
        %1163 = vmatprep.subr.mxu0 0.0
        %1164 = vmatpush1.msra.mxu0 0.0
        %1165 = vmatprep.subr.mxu0 0.0
        %1166 = vmatpush1.msra.mxu0 0.0
        %1167 = vmatprep.subr.mxu0 0.0
        %1168 = vmatpush1.msra.mxu0 0.0
        %1169 = vmatprep.subr.mxu0 0.0
        %1170 = vmatpush1.msra.mxu0 0.0
        %1171 = vmatprep.subr.mxu0 0.0
        %1172 = vmatpush1.msra.mxu0 0.0
        %1173 = vmatprep.subr.mxu0 0.0
        %1174 = vmatpush1.msra.mxu0 0.0
        %1175 = vmatprep.subr.mxu0 0.0
        %1176 = vmatpush1.msra.mxu0 0.0
        %1177 = vmatprep.mubr.f32.mxu0 0.0
        %1178 = vmatmul.mubr.f32.gmra.mrb[0].mxu0 %v1029
        %v1179 = vpop.f32.mrb[0].mxu0
        %v1180 = vadd.f32 0.0, %v1179
        %v1181 = vpop.f32.mrb[0].mxu0
        %v1182 = vadd.f32 0.0, %v1181
        %1183 = vdwg.mxu0
        %v1184 = vld [vmem:[%s5] sm:$0xff]
        %v1185 = vld [vmem:[%s5 + $0x8] sm:$0xff]
        %v1186 = vld [vmem:[%s5 + $0x10] sm:$0xff]
        %v1187 = vld [vmem:[%s5 + $0x18] sm:$0xff]
        %v1188 = vld [vmem:[%s5 + $0x20] sm:$0xff]
        %v1189 = vld [vmem:[%s5 + $0x28] sm:$0xff]
        %v1190 = vld [vmem:[%s5 + $0x30] sm:$0xff]
        %v1191 = vld [vmem:[%s5 + $0x38] sm:$0xff]
        %v1192 = vld [vmem:[%s5 + $0x40] sm:$0xff]
        %v1193 = vld [vmem:[%s5 + $0x48] sm:$0xff]
        %v1194 = vld [vmem:[%s5 + $0x50] sm:$0xff]
        %v1195 = vld [vmem:[%s5 + $0x58] sm:$0xff]
        %v1196 = vld [vmem:[%s5 + $0x60] sm:$0xff]
        %v1197 = vld [vmem:[%s5 + $0x68] sm:$0xff]
        %v1198 = vld [vmem:[%s5 + $0x70] sm:$0xff]
        %v1199 = vld [vmem:[%s5 + $0x78] sm:$0xff]
        %v1200 = vld [vmem:[%s5 + $0x80] sm:$0xff]
        %v1201 = vld [vmem:[%s5 + $0x88] sm:$0xff]
        %v1202 = vld [vmem:[%s5 + $0x90] sm:$0xff]
        %v1203 = vld [vmem:[%s5 + $0x98] sm:$0xff]
        %v1204 = vld [vmem:[%s5 + $0xa0] sm:$0xff]
        %v1205 = vld [vmem:[%s5 + $0xa8] sm:$0xff]
        %v1206 = vld [vmem:[%s5 + $0xb0] sm:$0xff]
        %v1207 = vld [vmem:[%s5 + $0xb8] sm:$0xff]
        %v1208 = vld [vmem:[%s5 + $0xc0] sm:$0xff]
        %v1209 = vld [vmem:[%s5 + $0xc8] sm:$0xff]
        %v1210 = vld [vmem:[%s5 + $0xd0] sm:$0xff]
        %v1211 = vld [vmem:[%s5 + $0xd8] sm:$0xff]
        %v1212 = vld [vmem:[%s5 + $0xe0] sm:$0xff]
        %v1213 = vld [vmem:[%s5 + $0xe8] sm:$0xff]
        %v1214 = vld [vmem:[%s5 + $0xf0] sm:$0xff]
        %v1215 = vld [vmem:[%s5 + $0xf8] sm:$0xff]
        %v1216 = vld [vmem:[%s5 + $0x100] sm:$0xff]
        %v1217 = vld [vmem:[%s5 + $0x108] sm:$0xff]
        %v1218 = vld [vmem:[%s5 + $0x110] sm:$0xff]
        %v1219 = vld [vmem:[%s5 + $0x118] sm:$0xff]
        %v1220 = vld [vmem:[%s5 + $0x120] sm:$0xff]
        %v1221 = vld [vmem:[%s5 + $0x128] sm:$0xff]
        %v1222 = vld [vmem:[%s5 + $0x130] sm:$0xff]
        %v1223 = vld [vmem:[%s5 + $0x138] sm:$0xff]
        %v1224 = vld [vmem:[%s5 + $0x140] sm:$0xff]
        %v1225 = vld [vmem:[%s5 + $0x148] sm:$0xff]
        %v1226 = vld [vmem:[%s5 + $0x150] sm:$0xff]
        %v1227 = vld [vmem:[%s5 + $0x158] sm:$0xff]
        %v1228 = vld [vmem:[%s5 + $0x160] sm:$0xff]
        %v1229 = vld [vmem:[%s5 + $0x168] sm:$0xff]
        %v1230 = vld [vmem:[%s5 + $0x170] sm:$0xff]
        %v1231 = vld [vmem:[%s5 + $0x178] sm:$0xff]
        %v1232 = vld [vmem:[%s5 + $0x180] sm:$0xff]
        %v1233 = vld [vmem:[%s5 + $0x188] sm:$0xff]
        %v1234 = vld [vmem:[%s5 + $0x190] sm:$0xff]
        %v1235 = vld [vmem:[%s5 + $0x198] sm:$0xff]
        %v1236 = vld [vmem:[%s5 + $0x1a0] sm:$0xf]
        %v1237 = vld [vmem:[%s6] sm:$0x1]
        %v1239 = vlaneseq
        %v1240 = vshrl.u32 %v1239, 7
        %v1241 = vsub.s32 0, %v1240
        %v1242 = vrot.slane %v1237, %v1241
        %vm1244 = vcmask 293888
        %v1246 = vsel %vm1244, %v1182, 0
        %v1249 = vsel %vm521, %v1236, 0
        %1251 = vmatprep.subr.mxu0 0.0
        %1252 = vmatpush1.msra.mxu0 %v1184
        %1253 = vmatprep.subr.mxu0 0.0
        %1254 = vmatpush1.msra.mxu0 %v1185
        %1255 = vmatprep.subr.mxu0 0.0
        %1256 = vmatpush1.msra.mxu0 %v1186
        %1257 = vmatprep.subr.mxu0 0.0
        %1258 = vmatpush1.msra.mxu0 %v1187
        %1259 = vmatprep.subr.mxu0 0.0
        %1260 = vmatpush1.msra.mxu0 %v1188
        %1261 = vmatprep.subr.mxu0 0.0
        %1262 = vmatpush1.msra.mxu0 %v1189
        %1263 = vmatprep.subr.mxu0 0.0
        %1264 = vmatpush1.msra.mxu0 %v1190
        %1265 = vmatprep.subr.mxu0 0.0
        %1266 = vmatpush1.msra.mxu0 %v1191
        %1267 = vmatprep.subr.mxu0 0.0
        %1268 = vmatpush1.msra.mxu0 %v1192
        %1269 = vmatprep.subr.mxu0 0.0
        %1270 = vmatpush1.msra.mxu0 %v1193
        %1271 = vmatprep.subr.mxu0 0.0
        %1272 = vmatpush1.msra.mxu0 %v1194
        %1273 = vmatprep.subr.mxu0 0.0
        %1274 = vmatpush1.msra.mxu0 %v1195
        %1275 = vmatprep.subr.mxu0 0.0
        %1276 = vmatpush1.msra.mxu0 %v1196
        %1277 = vmatprep.subr.mxu0 0.0
        %1278 = vmatpush1.msra.mxu0 %v1197
        %1279 = vmatprep.subr.mxu0 0.0
        %1280 = vmatpush1.msra.mxu0 %v1198
        %1281 = vmatprep.subr.mxu0 0.0
        %1282 = vmatpush1.msra.mxu0 %v1199
        %1283 = vmatprep.subr.mxu0 0.0
        %1284 = vmatpush1.msra.mxu0 %v1200
        %1285 = vmatprep.subr.mxu0 0.0
        %1286 = vmatpush1.msra.mxu0 %v1201
        %1287 = vmatprep.subr.mxu0 0.0
        %1288 = vmatpush1.msra.mxu0 %v1202
        %1289 = vmatprep.subr.mxu0 0.0
        %1290 = vmatpush1.msra.mxu0 %v1203
        %1291 = vmatprep.subr.mxu0 0.0
        %1292 = vmatpush1.msra.mxu0 %v1204
        %1293 = vmatprep.subr.mxu0 0.0
        %1294 = vmatpush1.msra.mxu0 %v1205
        %1295 = vmatprep.subr.mxu0 0.0
        %1296 = vmatpush1.msra.mxu0 %v1206
        %1297 = vmatprep.subr.mxu0 0.0
        %1298 = vmatpush1.msra.mxu0 %v1207
        %1299 = vmatprep.subr.mxu0 0.0
        %1300 = vmatpush1.msra.mxu0 %v1208
        %1301 = vmatprep.subr.mxu0 0.0
        %1302 = vmatpush1.msra.mxu0 %v1209
        %1303 = vmatprep.subr.mxu0 0.0
        %1304 = vmatpush1.msra.mxu0 %v1210
        %1305 = vmatprep.subr.mxu0 0.0
        %1306 = vmatpush1.msra.mxu0 %v1211
        %1307 = vmatprep.subr.mxu0 0.0
        %1308 = vmatpush1.msra.mxu0 %v1212
        %1309 = vmatprep.subr.mxu0 0.0
        %1310 = vmatpush1.msra.mxu0 %v1213
        %1311 = vmatprep.subr.mxu0 0.0
        %1312 = vmatpush1.msra.mxu0 %v1214
        %1313 = vmatprep.subr.mxu0 0.0
        %1314 = vmatpush1.msra.mxu0 %v1215
        %1315 = vmatprep.mubr.f32.mxu0 %v1111
        %1316 = vmatmul.mubr.f32.gmra.mrb[0].mxu0 %v1109
        %v1317 = vpop.f32.mrb[0].mxu0
        %v1318 = vadd.f32 %v1242, %v1317
        %v1319 = vpop.f32.mrb[0].mxu0
        %1320 = vdwg.mxu0
        %1321 = vmatprep.subr.mxu0 0.0
        %1322 = vmatpush1.msra.mxu0 %v1216
        %1323 = vmatprep.subr.mxu0 0.0
        %1324 = vmatpush1.msra.mxu0 %v1217
        %1325 = vmatprep.subr.mxu0 0.0
        %1326 = vmatpush1.msra.mxu0 %v1218
        %1327 = vmatprep.subr.mxu0 0.0
        %1328 = vmatpush1.msra.mxu0 %v1219
        %1329 = vmatprep.subr.mxu0 0.0
        %1330 = vmatpush1.msra.mxu0 %v1220
        %1331 = vmatprep.subr.mxu0 0.0
        %1332 = vmatpush1.msra.mxu0 %v1221
        %1333 = vmatprep.subr.mxu0 0.0
        %1334 = vmatpush1.msra.mxu0 %v1222
        %1335 = vmatprep.subr.mxu0 0.0
        %1336 = vmatpush1.msra.mxu0 %v1223
        %1337 = vmatprep.subr.mxu0 0.0
        %1338 = vmatpush1.msra.mxu0 %v1224
        %1339 = vmatprep.subr.mxu0 0.0
        %1340 = vmatpush1.msra.mxu0 %v1225
        %1341 = vmatprep.subr.mxu0 0.0
        %1342 = vmatpush1.msra.mxu0 %v1226
        %1343 = vmatprep.subr.mxu0 0.0
        %1344 = vmatpush1.msra.mxu0 %v1227
        %1345 = vmatprep.subr.mxu0 0.0
        %1346 = vmatpush1.msra.mxu0 %v1228
        %1347 = vmatprep.subr.mxu0 0.0
        %1348 = vmatpush1.msra.mxu0 %v1229
        %1349 = vmatprep.subr.mxu0 0.0
        %1350 = vmatpush1.msra.mxu0 %v1230
        %1351 = vmatprep.subr.mxu0 0.0
        %1352 = vmatpush1.msra.mxu0 %v1231
        %1353 = vmatprep.subr.mxu0 0.0
        %1354 = vmatpush1.msra.mxu0 %v1232
        %1355 = vmatprep.subr.mxu0 0.0
        %1356 = vmatpush1.msra.mxu0 %v1233
        %1357 = vmatprep.subr.mxu0 0.0
        %1358 = vmatpush1.msra.mxu0 %v1234
        %1359 = vmatprep.subr.mxu0 0.0
        %1360 = vmatpush1.msra.mxu0 %v1235
        %1361 = vmatprep.subr.mxu0 0.0
        %1362 = vmatpush1.msra.mxu0 %v1249
        %1363 = vmatprep.subr.mxu0 0.0
        %1364 = vmatpush1.msra.mxu0 0.0
        %1365 = vmatprep.subr.mxu0 0.0
        %1366 = vmatpush1.msra.mxu0 0.0
        %1367 = vmatprep.subr.mxu0 0.0
        %1368 = vmatpush1.msra.mxu0 0.0
        %1369 = vmatprep.subr.mxu0 0.0
        %1370 = vmatpush1.msra.mxu0 0.0
        %1371 = vmatprep.subr.mxu0 0.0
        %1372 = vmatpush1.msra.mxu0 0.0
        %1373 = vmatprep.subr.mxu0 0.0
        %1374 = vmatpush1.msra.mxu0 0.0
        %1375 = vmatprep.subr.mxu0 0.0
        %1376 = vmatpush1.msra.mxu0 0.0
        %1377 = vmatprep.subr.mxu0 0.0
        %1378 = vmatpush1.msra.mxu0 0.0
        %1379 = vmatprep.subr.mxu0 0.0
        %1380 = vmatpush1.msra.mxu0 0.0
        %1381 = vmatprep.subr.mxu0 0.0
        %1382 = vmatpush1.msra.mxu0 0.0
        %1383 = vmatprep.subr.mxu0 0.0
        %1384 = vmatpush1.msra.mxu0 0.0
        %1385 = vmatprep.mubr.f32.mxu0 %v1246
        %1386 = vmatmul.mubr.f32.gmra.mrb[0].mxu0 %v1180
        %v1387 = vpop.f32.mrb[0].mxu0
        %v1388 = vadd.f32 %v1318, %v1387
        %v1389 = vpop.f32.mrb[0].mxu0
        %1390 = vdwg.mxu0
        %v1392 = vrot.slane %v1388, 1
        %1393 = vrot.lane.b32.xlu0 %v1392, 80
        %v1394 = vpop.permute.xlu0 %1393
        %v1396 = vrot.slane %v1388, 2
        %1397 = vrot.lane.b32.xlu0 %v1396, 32
        %v1398 = vpop.permute.xlu0 %1397
        %v1400 = vrot.slane %v1388, 3
        %1401 = vrot.lane.b32.xlu0 %v1400, 112
        %v1402 = vpop.permute.xlu0 %1401
        %v1404 = vrot.slane %v1388, 4
        %1405 = vrot.lane.b32.xlu0 %v1404, 64
        %v1406 = vpop.permute.xlu0 %1405
        %vm1408 = vcmask 654336
        %v1409 = vsel %vm1408, %v1388, %v1394
        %v1410 = vsel %vm532, %v1394, %v1398
        %v1411 = vsel %vm870, %v1410, %v1402
        %v1412 = vsel %vm537, %v1402, %v1406
        %v1413 = vld [vmem:[%s7] sm:$0xff]
        %v1414 = vld [vmem:[%s7 + $0x8] sm:$0xff]
        %v1415 = vld [vmem:[%s7 + $0x10] sm:$0xff]
        %v1416 = vld [vmem:[%s7 + $0x18] sm:$0xff]
        %v1417 = vld [vmem:[%s7 + $0x20] sm:$0xff]
        %v1418 = vld [vmem:[%s7 + $0x28] sm:$0xff]
        %v1419 = vld [vmem:[%s7 + $0x30] sm:$0xff]
        %v1420 = vld [vmem:[%s7 + $0x38] sm:$0xff]
        %v1421 = vld [vmem:[%s7 + $0x40] sm:$0xff]
        %v1422 = vld [vmem:[%s7 + $0x48] sm:$0xff]
        %v1423 = vld [vmem:[%s7 + $0x50] sm:$0xff]
        %v1424 = vld [vmem:[%s7 + $0x58] sm:$0xff]
        %v1425 = vld [vmem:[%s7 + $0x60] sm:$0xff]
        %v1426 = vld [vmem:[%s7 + $0x68] sm:$0xff]
        %v1427 = vld [vmem:[%s7 + $0x70] sm:$0xff]
        %v1428 = vld [vmem:[%s7 + $0x78] sm:$0xff]
        %v1429 = vld [vmem:[%s7 + $0x80] sm:$0xff]
        %v1430 = vld [vmem:[%s7 + $0x88] sm:$0xff]
        %v1431 = vld [vmem:[%s7 + $0x90] sm:$0xff]
        %v1432 = vld [vmem:[%s7 + $0x98] sm:$0xff]
        %v1433 = vld [vmem:[%s7 + $0xa0] sm:$0xff]
        %v1434 = vld [vmem:[%s7 + $0xa8] sm:$0xff]
        %v1435 = vld [vmem:[%s7 + $0xb0] sm:$0xff]
        %v1436 = vld [vmem:[%s7 + $0xb8] sm:$0xff]
        %v1437 = vld [vmem:[%s7 + $0xc0] sm:$0xff]
        %v1438 = vld [vmem:[%s7 + $0xc8] sm:$0xff]
        %v1439 = vld [vmem:[%s7 + $0xd0] sm:$0xff]
        %v1440 = vld [vmem:[%s7 + $0xd8] sm:$0xff]
        %v1441 = vld [vmem:[%s7 + $0xe0] sm:$0xff]
        %v1442 = vld [vmem:[%s7 + $0xe8] sm:$0xff]
        %v1443 = vld [vmem:[%s7 + $0xf0] sm:$0xff]
        %v1444 = vld [vmem:[%s7 + $0xf8] sm:$0xff]
        %v1445 = vld [vmem:[%s7 + $0x100] sm:$0xff]
        %v1446 = vld [vmem:[%s7 + $0x108] sm:$0xff]
        %v1447 = vld [vmem:[%s7 + $0x110] sm:$0xff]
        %v1448 = vld [vmem:[%s7 + $0x118] sm:$0xff]
        %v1449 = vld [vmem:[%s7 + $0x120] sm:$0xff]
        %v1450 = vld [vmem:[%s7 + $0x128] sm:$0xff]
        %v1451 = vld [vmem:[%s7 + $0x130] sm:$0xff]
        %v1452 = vld [vmem:[%s7 + $0x138] sm:$0xff]
        %v1453 = vld [vmem:[%s7 + $0x140] sm:$0xff]
        %v1454 = vld [vmem:[%s7 + $0x148] sm:$0xff]
        %v1455 = vld [vmem:[%s7 + $0x150] sm:$0xff]
        %v1456 = vld [vmem:[%s7 + $0x158] sm:$0xff]
        %v1457 = vld [vmem:[%s7 + $0x160] sm:$0xff]
        %v1458 = vld [vmem:[%s7 + $0x168] sm:$0xff]
        %v1459 = vld [vmem:[%s7 + $0x170] sm:$0xff]
        %v1460 = vld [vmem:[%s7 + $0x178] sm:$0xff]
        %v1461 = vld [vmem:[%s7 + $0x180] sm:$0xff]
        %v1462 = vld [vmem:[%s7 + $0x188] sm:$0xff]
        %v1463 = vld [vmem:[%s8] sm:$0x1]
        %vm1464 = vcmask 130048
        %v1465 = vsel %vm1464, %v1406, 0
        %1467 = vmatprep.subr.mxu0 0.0
        %1468 = vmatpush1.msra.mxu0 %v1413
        %1469 = vmatprep.subr.mxu0 0.0
        %1470 = vmatpush1.msra.mxu0 %v1414
        %1471 = vmatprep.subr.mxu0 0.0
        %1472 = vmatpush1.msra.mxu0 %v1415
        %1473 = vmatprep.subr.mxu0 0.0
        %1474 = vmatpush1.msra.mxu0 %v1416
        %1475 = vmatprep.subr.mxu0 0.0
        %1476 = vmatpush1.msra.mxu0 %v1417
        %1477 = vmatprep.subr.mxu0 0.0
        %1478 = vmatpush1.msra.mxu0 %v1418
        %1479 = vmatprep.subr.mxu0 0.0
        %1480 = vmatpush1.msra.mxu0 %v1419
        %1481 = vmatprep.subr.mxu0 0.0
        %1482 = vmatpush1.msra.mxu0 %v1420
        %1483 = vmatprep.subr.mxu0 0.0
        %1484 = vmatpush1.msra.mxu0 %v1421
        %1485 = vmatprep.subr.mxu0 0.0
        %1486 = vmatpush1.msra.mxu0 %v1422
        %1487 = vmatprep.subr.mxu0 0.0
        %1488 = vmatpush1.msra.mxu0 %v1423
        %1489 = vmatprep.subr.mxu0 0.0
        %1490 = vmatpush1.msra.mxu0 %v1424
        %1491 = vmatprep.subr.mxu0 0.0
        %1492 = vmatpush1.msra.mxu0 %v1425
        %1493 = vmatprep.subr.mxu0 0.0
        %1494 = vmatpush1.msra.mxu0 %v1426
        %1495 = vmatprep.subr.mxu0 0.0
        %1496 = vmatpush1.msra.mxu0 %v1427
        %1497 = vmatprep.subr.mxu0 0.0
        %1498 = vmatpush1.msra.mxu0 %v1428
        %1499 = vmatprep.subr.mxu0 0.0
        %1500 = vmatpush1.msra.mxu0 %v1429
        %1501 = vmatprep.subr.mxu0 0.0
        %1502 = vmatpush1.msra.mxu0 %v1430
        %1503 = vmatprep.subr.mxu0 0.0
        %1504 = vmatpush1.msra.mxu0 %v1431
        %1505 = vmatprep.subr.mxu0 0.0
        %1506 = vmatpush1.msra.mxu0 %v1432
        %1507 = vmatprep.subr.mxu0 0.0
        %1508 = vmatpush1.msra.mxu0 %v1433
        %1509 = vmatprep.subr.mxu0 0.0
        %1510 = vmatpush1.msra.mxu0 %v1434
        %1511 = vmatprep.subr.mxu0 0.0
        %1512 = vmatpush1.msra.mxu0 %v1435
        %1513 = vmatprep.subr.mxu0 0.0
        %1514 = vmatpush1.msra.mxu0 %v1436
        %1515 = vmatprep.subr.mxu0 0.0
        %1516 = vmatpush1.msra.mxu0 %v1437
        %1517 = vmatprep.subr.mxu0 0.0
        %1518 = vmatpush1.msra.mxu0 %v1438
        %1519 = vmatprep.subr.mxu0 0.0
        %1520 = vmatpush1.msra.mxu0 %v1439
        %1521 = vmatprep.subr.mxu0 0.0
        %1522 = vmatpush1.msra.mxu0 %v1440
        %1523 = vmatprep.subr.mxu0 0.0
        %1524 = vmatpush1.msra.mxu0 %v1441
        %1525 = vmatprep.subr.mxu0 0.0
        %1526 = vmatpush1.msra.mxu0 %v1442
        %1527 = vmatprep.subr.mxu0 0.0
        %1528 = vmatpush1.msra.mxu0 %v1443
        %1529 = vmatprep.subr.mxu0 0.0
        %1530 = vmatpush1.msra.mxu0 %v1444
        %1531 = vmatprep.mubr.f32.mxu0 %v1411
        %1532 = vmatmul.mubr.f32.gmra.mrb[0].mxu0 %v1409
        %v1533 = vpop.f32.mrb[0].mxu0
        %v1534 = vadd.f32 %v1463, %v1533
        %v1535 = vpop.f32.mrb[0].mxu0
        %1536 = vdwg.mxu0
        %1537 = vmatprep.subr.mxu0 0.0
        %1538 = vmatpush1.msra.mxu0 %v1445
        %1539 = vmatprep.subr.mxu0 0.0
        %1540 = vmatpush1.msra.mxu0 %v1446
        %1541 = vmatprep.subr.mxu0 0.0
        %1542 = vmatpush1.msra.mxu0 %v1447
        %1543 = vmatprep.subr.mxu0 0.0
        %1544 = vmatpush1.msra.mxu0 %v1448
        %1545 = vmatprep.subr.mxu0 0.0
        %1546 = vmatpush1.msra.mxu0 %v1449
        %1547 = vmatprep.subr.mxu0 0.0
        %1548 = vmatpush1.msra.mxu0 %v1450
        %1549 = vmatprep.subr.mxu0 0.0
        %1550 = vmatpush1.msra.mxu0 %v1451
        %1551 = vmatprep.subr.mxu0 0.0
        %1552 = vmatpush1.msra.mxu0 %v1452
        %1553 = vmatprep.subr.mxu0 0.0
        %1554 = vmatpush1.msra.mxu0 %v1453
        %1555 = vmatprep.subr.mxu0 0.0
        %1556 = vmatpush1.msra.mxu0 %v1454
        %1557 = vmatprep.subr.mxu0 0.0
        %1558 = vmatpush1.msra.mxu0 %v1455
        %1559 = vmatprep.subr.mxu0 0.0
        %1560 = vmatpush1.msra.mxu0 %v1456
        %1561 = vmatprep.subr.mxu0 0.0
        %1562 = vmatpush1.msra.mxu0 %v1457
        %1563 = vmatprep.subr.mxu0 0.0
        %1564 = vmatpush1.msra.mxu0 %v1458
        %1565 = vmatprep.subr.mxu0 0.0
        %1566 = vmatpush1.msra.mxu0 %v1459
        %1567 = vmatprep.subr.mxu0 0.0
        %1568 = vmatpush1.msra.mxu0 %v1460
        %1569 = vmatprep.subr.mxu0 0.0
        %1570 = vmatpush1.msra.mxu0 %v1461
        %1571 = vmatprep.subr.mxu0 0.0
        %1572 = vmatpush1.msra.mxu0 %v1462
        %1573 = vmatprep.subr.mxu0 0.0
        %1574 = vmatpush1.msra.mxu0 0.0
        %1575 = vmatprep.subr.mxu0 0.0
        %1576 = vmatpush1.msra.mxu0 0.0
        %1577 = vmatprep.subr.mxu0 0.0
        %1578 = vmatpush1.msra.mxu0 0.0
        %1579 = vmatprep.subr.mxu0 0.0
        %1580 = vmatpush1.msra.mxu0 0.0
        %1581 = vmatprep.subr.mxu0 0.0
        %1582 = vmatpush1.msra.mxu0 0.0
        %1583 = vmatprep.subr.mxu0 0.0
        %1584 = vmatpush1.msra.mxu0 0.0
        %1585 = vmatprep.subr.mxu0 0.0
        %1586 = vmatpush1.msra.mxu0 0.0
        %1587 = vmatprep.subr.mxu0 0.0
        %1588 = vmatpush1.msra.mxu0 0.0
        %1589 = vmatprep.subr.mxu0 0.0
        %1590 = vmatpush1.msra.mxu0 0.0
        %1591 = vmatprep.subr.mxu0 0.0
        %1592 = vmatpush1.msra.mxu0 0.0
        %1593 = vmatprep.subr.mxu0 0.0
        %1594 = vmatpush1.msra.mxu0 0.0
        %1595 = vmatprep.subr.mxu0 0.0
        %1596 = vmatpush1.msra.mxu0 0.0
        %1597 = vmatprep.subr.mxu0 0.0
        %1598 = vmatpush1.msra.mxu0 0.0
        %1599 = vmatprep.subr.mxu0 0.0
        %1600 = vmatpush1.msra.mxu0 0.0
        %1601 = vmatprep.mubr.f32.mxu0 %v1465
        %1602 = vmatmul.mubr.f32.gmra.mrb[0].mxu0 %v1412
        %v1603 = vpop.f32.mrb[0].mxu0
        %v1604 = vadd.f32 %v1534, %v1603
        %v1605 = vpop.f32.mrb[0].mxu0
        %1606 = vdwg.mxu0
        %v1607 = vmax.f32 %v1604, 0.0
        %v1608 = vld [vmem:[%s9] sm:$0xff]
        %v1609 = vld [vmem:[%s9 + $0x8] sm:$0xff]
        %v1610 = vld [vmem:[%s9 + $0x10] sm:$0xff]
        %v1611 = vld [vmem:[%s9 + $0x18] sm:$0xff]
        %v1612 = vld [vmem:[%s9 + $0x20] sm:$0xff]
        %v1613 = vld [vmem:[%s9 + $0x28] sm:$0xff]
        %v1614 = vld [vmem:[%s9 + $0x30] sm:$0xff]
        %v1615 = vld [vmem:[%s9 + $0x38] sm:$0xff]
        %v1616 = vld [vmem:[%s9 + $0x40] sm:$0xff]
        %v1617 = vld [vmem:[%s9 + $0x48] sm:$0xff]
        %v1618 = vld [vmem:[%s9 + $0x50] sm:$0xff]
        %v1619 = vld [vmem:[%s9 + $0x58] sm:$0xff]
        %v1620 = vld [vmem:[%s9 + $0x60] sm:$0xff]
        %v1621 = vld [vmem:[%s9 + $0x68] sm:$0xff]
        %v1622 = vld [vmem:[%s9 + $0x70] sm:$0xff]
        %v1623 = vld [vmem:[%s9 + $0x78] sm:$0xff]
        %v1624 = vld [vmem:[%s10] sm:$0x1]
        %1625 = vmatprep.subr.mxu0 0.0
        %1626 = vmatpush1.msra.mxu0 %v1608
        %1627 = vmatprep.subr.mxu0 0.0
        %1628 = vmatpush1.msra.mxu0 %v1609
        %1629 = vmatprep.subr.mxu0 0.0
        %1630 = vmatpush1.msra.mxu0 %v1610
        %1631 = vmatprep.subr.mxu0 0.0
        %1632 = vmatpush1.msra.mxu0 %v1611
        %1633 = vmatprep.subr.mxu0 0.0
        %1634 = vmatpush1.msra.mxu0 %v1612
        %1635 = vmatprep.subr.mxu0 0.0
        %1636 = vmatpush1.msra.mxu0 %v1613
        %1637 = vmatprep.subr.mxu0 0.0
        %1638 = vmatpush1.msra.mxu0 %v1614
        %1639 = vmatprep.subr.mxu0 0.0
        %1640 = vmatpush1.msra.mxu0 %v1615
        %1641 = vmatprep.subr.mxu0 0.0
        %1642 = vmatpush1.msra.mxu0 %v1616
        %1643 = vmatprep.subr.mxu0 0.0
        %1644 = vmatpush1.msra.mxu0 %v1617
        %1645 = vmatprep.subr.mxu0 0.0
        %1646 = vmatpush1.msra.mxu0 %v1618
        %1647 = vmatprep.subr.mxu0 0.0
        %1648 = vmatpush1.msra.mxu0 %v1619
        %1649 = vmatprep.subr.mxu0 0.0
        %1650 = vmatpush1.msra.mxu0 %v1620
        %1651 = vmatprep.subr.mxu0 0.0
        %1652 = vmatpush1.msra.mxu0 %v1621
        %1653 = vmatprep.subr.mxu0 0.0
        %1654 = vmatpush1.msra.mxu0 %v1622
        %1655 = vmatprep.subr.mxu0 0.0
        %1656 = vmatpush1.msra.mxu0 %v1623
        %1657 = vmatprep.subr.mxu0 0.0
        %1658 = vmatpush1.msra.mxu0 0.0
        %1659 = vmatprep.subr.mxu0 0.0
        %1660 = vmatpush1.msra.mxu0 0.0
        %1661 = vmatprep.subr.mxu0 0.0
        %1662 = vmatpush1.msra.mxu0 0.0
        %1663 = vmatprep.subr.mxu0 0.0
        %1664 = vmatpush1.msra.mxu0 0.0
        %1665 = vmatprep.subr.mxu0 0.0
        %1666 = vmatpush1.msra.mxu0 0.0
        %1667 = vmatprep.subr.mxu0 0.0
        %1668 = vmatpush1.msra.mxu0 0.0
        %1669 = vmatprep.subr.mxu0 0.0
        %1670 = vmatpush1.msra.mxu0 0.0
        %1671 = vmatprep.subr.mxu0 0.0
        %1672 = vmatpush1.msra.mxu0 0.0
        %1673 = vmatprep.subr.mxu0 0.0
        %1674 = vmatpush1.msra.mxu0 0.0
        %1675 = vmatprep.subr.mxu0 0.0
        %1676 = vmatpush1.msra.mxu0 0.0
        %1677 = vmatprep.subr.mxu0 0.0
        %1678 = vmatpush1.msra.mxu0 0.0
        %1679 = vmatprep.subr.mxu0 0.0
        %1680 = vmatpush1.msra.mxu0 0.0
        %1681 = vmatprep.subr.mxu0 0.0
        %1682 = vmatpush1.msra.mxu0 0.0
        %1683 = vmatprep.subr.mxu0 0.0
        %1684 = vmatpush1.msra.mxu0 0.0
        %1685 = vmatprep.subr.mxu0 0.0
        %1686 = vmatpush1.msra.mxu0 0.0
        %1687 = vmatprep.subr.mxu0 0.0
        %1688 = vmatpush1.msra.mxu0 0.0
        %1689 = vmatprep.mubr.f32.mxu0 0.0
        %1690 = vmatmul.mubr.f32.gmra.mrb[0].mxu0 %v1607
        %v1691 = vpop.f32.mrb[0].mxu0
        %v1692 = vadd.f32 %v1624, %v1691
        %v1693 = vpop.f32.mrb[0].mxu0
        %1694 = vdwg.mxu0
        %v1695 = vmax.f32 %v1692, 0.0
        %v1696 = vld [vmem:[#allocation2] sm:$0xff]
        %v1697 = vld [vmem:[#allocation2 + $0x8] sm:$0xff]
        %v1698 = vld [vmem:[#allocation2 + $0x10] sm:$0xff]
        %v1699 = vld [vmem:[#allocation2 + $0x18] sm:$0xff]
        %v1700 = vld [vmem:[#allocation2 + $0x20] sm:$0xff]
        %v1701 = vld [vmem:[#allocation2 + $0x28] sm:$0xff]
        %v1702 = vld [vmem:[#allocation2 + $0x30] sm:$0xff]
        %v1703 = vld [vmem:[#allocation2 + $0x38] sm:$0xff]
        %v1704 = vld [vmem:[#allocation2 + $0x40] sm:$0xff]
        %v1705 = vld [vmem:[#allocation2 + $0x48] sm:$0xff]
        %v1706 = vld [vmem:[#allocation2 + $0x50] sm:$0xff]
        %v1707 = vld [vmem:[#allocation2 + $0x58] sm:$0xff]
        %v1708 = vld [vmem:[#allocation2 + $0x60] sm:$0xff]
        %v1709 = vld [vmem:[#allocation2 + $0x68] sm:$0xff]
        %v1710 = vld [vmem:[#allocation2 + $0x70] sm:$0xff]
        %v1711 = vld [vmem:[#allocation2 + $0x78] sm:$0xff]
        %v1712 = vld [vmem:[%s12] sm:$0x1]
        %1713 = vmatprep.subr.mxu0 0.0
        %1714 = vmatpush1.msra.mxu0 %v1696
        %1715 = vmatprep.subr.mxu0 0.0
        %1716 = vmatpush1.msra.mxu0 %v1697
        %1717 = vmatprep.subr.mxu0 0.0
        %1718 = vmatpush1.msra.mxu0 %v1698
        %1719 = vmatprep.subr.mxu0 0.0
        %1720 = vmatpush1.msra.mxu0 %v1699
        %1721 = vmatprep.subr.mxu0 0.0
        %1722 = vmatpush1.msra.mxu0 %v1700
        %1723 = vmatprep.subr.mxu0 0.0
        %1724 = vmatpush1.msra.mxu0 %v1701
        %1725 = vmatprep.subr.mxu0 0.0
        %1726 = vmatpush1.msra.mxu0 %v1702
        %1727 = vmatprep.subr.mxu0 0.0
        %1728 = vmatpush1.msra.mxu0 %v1703
        %1729 = vmatprep.subr.mxu0 0.0
        %1730 = vmatpush1.msra.mxu0 %v1704
        %1731 = vmatprep.subr.mxu0 0.0
        %1732 = vmatpush1.msra.mxu0 %v1705
        %1733 = vmatprep.subr.mxu0 0.0
        %1734 = vmatpush1.msra.mxu0 %v1706
        %1735 = vmatprep.subr.mxu0 0.0
        %1736 = vmatpush1.msra.mxu0 %v1707
        %1737 = vmatprep.subr.mxu0 0.0
        %1738 = vmatpush1.msra.mxu0 %v1708
        %1739 = vmatprep.subr.mxu0 0.0
        %1740 = vmatpush1.msra.mxu0 %v1709
        %1741 = vmatprep.subr.mxu0 0.0
        %1742 = vmatpush1.msra.mxu0 %v1710
        %1743 = vmatprep.subr.mxu0 0.0
        %1744 = vmatpush1.msra.mxu0 %v1711
        %1745 = vmatprep.subr.mxu0 0.0
        %1746 = vmatpush1.msra.mxu0 0.0
        %1747 = vmatprep.subr.mxu0 0.0
        %1748 = vmatpush1.msra.mxu0 0.0
        %1749 = vmatprep.subr.mxu0 0.0
        %1750 = vmatpush1.msra.mxu0 0.0
        %1751 = vmatprep.subr.mxu0 0.0
        %1752 = vmatpush1.msra.mxu0 0.0
        %1753 = vmatprep.subr.mxu0 0.0
        %1754 = vmatpush1.msra.mxu0 0.0
        %1755 = vmatprep.subr.mxu0 0.0
        %1756 = vmatpush1.msra.mxu0 0.0
        %1757 = vmatprep.subr.mxu0 0.0
        %1758 = vmatpush1.msra.mxu0 0.0
        %1759 = vmatprep.subr.mxu0 0.0
        %1760 = vmatpush1.msra.mxu0 0.0
        %1761 = vmatprep.subr.mxu0 0.0
        %1762 = vmatpush1.msra.mxu0 0.0
        %1763 = vmatprep.subr.mxu0 0.0
        %1764 = vmatpush1.msra.mxu0 0.0
        %1765 = vmatprep.subr.mxu0 0.0
        %1766 = vmatpush1.msra.mxu0 0.0
        %1767 = vmatprep.subr.mxu0 0.0
        %1768 = vmatpush1.msra.mxu0 0.0
        %1769 = vmatprep.subr.mxu0 0.0
        %1770 = vmatpush1.msra.mxu0 0.0
        %1771 = vmatprep.subr.mxu0 0.0
        %1772 = vmatpush1.msra.mxu0 0.0
        %1773 = vmatprep.subr.mxu0 0.0
        %1774 = vmatpush1.msra.mxu0 0.0
        %1775 = vmatprep.subr.mxu0 0.0
        %1776 = vmatpush1.msra.mxu0 0.0
        %1777 = vmatprep.mubr.f32.mxu0 0.0
        %1778 = vmatmul.mubr.f32.gmra.mrb[0].mxu0 %v1695
        %v1779 = vpop.f32.mrb[0].mxu0
        %v1780 = vadd.f32 %v1712, %v1779
        %v1781 = vpop.f32.mrb[0].mxu0
        %1782 = vdwg.mxu0
        %1783 = vst [vmem:[%s447] sm:$0x1] %v1780
        %s1784 = sand.u32 %s314, 1
        %s1785 = scalar_lea.sflag [#allocation4], %s1784
        %s1786 = sand.u32 %s314, 1
        %s1787 = scalar_lea.vmem [#allocation5], %s1786
        // Predicated region
        $region77: #{lenet5_forward.1} parent=71 // pred_check
          %p1788 = pneg %p324
        $region78: #{lenet5_forward.1} parent=71 // pred_check_branch
          %1790 = sbr.rel (%p1788) target = $region80
        $region79: #{lenet5_forward.1} parent=71 // pred_region
          %s1792 = ssub.s32 16, 16
          %1793 = vsyncadd %s1785, %s1792
          %s1794 = smul.addr %s28, 16
          %s1795 = scalar_lea.hbm %s13, %s1794
          %s1797 = sshll.u32 %s1787, 4
          %s1798 = int_to_ptr.vmem [resolvable:$true] %s1797
          %1800 = dma.vmem_to_hbm [thread:$0]  %s1798, 16, %s1795, %s1785
        $region80: #{lenet5_forward.1} parent=71 // pred_fallthru
          _
      $region72: #{lenet5_forward.1} parent=5 // pred_fallthru
        _
      %p1801 = scmp.le.s32.totalorder 2, %s23
      // Predicated region
      $region81: #{lenet5_forward.1} parent=5 // pred_check
        %p1802 = pneg %p1801
      $region82: #{lenet5_forward.1} parent=5 // pred_check_branch
        %1804 = sbr.rel (%p1802) target = $region84
      $region83: #{lenet5_forward.1} parent=5 // pred_region
        %s1805 = ssub.s32 %s23, 2
        // Predicated region
        $region85: #{lenet5_forward.1} parent=83 // pred_check
          %p1806 = pneg %p330
        $region86: #{lenet5_forward.1} parent=83 // pred_check_branch
          %1808 = sbr.rel (%p1806) target = $region88
        $region87: #{lenet5_forward.1} parent=83 // pred_region
          %s1809 = sand.u32 %s315, 1
          %s1810 = scalar_lea.sflag [#allocation4], %s1809
          %s1811 = sand.u32 %s315, 1
          %s1812 = scalar_lea.vmem [#allocation5], %s1811
          %1813 = dma.done %s1810, 16
        $region88: #{lenet5_forward.1} parent=83 // pred_fallthru
          _
      $region84: #{lenet5_forward.1} parent=5 // pred_fallthru
        _
    $region6: #{lenet5_forward.1} parent=1 // loop_footer
      %s27 = sadd.s32 1, %s23
    $region7: #{lenet5_forward.1} parent=1 // loop_footer_branch
      %22 = sbr.rel target = $region3
    $region8: #{lenet5_forward.1} parent=1 // loop_exit
      _
    %1814 = vsyncpa [#allocation3], 1
    %s1815 = scalar_lea.sflag [#allocation3], 1
    %1816 = vsyncpa %s1815, 1
    %1817 = vsyncpa [#allocation4], 1
    %s1818 = scalar_lea.sflag [#allocation4], 1
    %1819 = vsyncpa %s1818, 1

</llo_original>
